<compile_context>
chip_gen: v5e
topology: v5e:2x2
jax: 0.10.0
libtpu: 0.0.40
codegen_flags: <defaults>
</compile_context>

<pallas_src>
import numpy as np
import jax
import jax.numpy as jnp
from jax.experimental import pallas as pl
from jax.experimental.pallas import tpu as pltpu

# Model dims (small, consistent with the module; embed_dim must be /16 for groups=4)
VOCAB = 50
VP = 128        # vocab padded to one lane tile for the one-hot gather
E = 64          # embed_dim
E4 = E // 4     # per-scale conv output channels
HID = 128       # hidden_dim of the fusion MLP
STYLE = 32      # style_dim
B = 2
T = 16
BE = B * E      # packed lane width (batch-in-lanes)
PAD = 8         # max dilation padding (reference only)
DILS = (1, 2, 4, 8)
N_SSM = 3
LN_EPS = 1e-5
# unique time shifts of the 4 dilated kernel-size-3 convs (center taps merged)
SHIFTS = (-8, -4, -2, -1, 0, 1, 2, 4, 8)


def encoder_kernel(tok_ref, st_ref, emb_ref, wgb_ref, bgb_ref, m_ref,
                   wtap_ref, beff_ref, w1_ref, b1_ref, w2_ref, b2_ref, out_ref):
    # ---- embedding gather fused in-kernel: one-hot bf16 matmul on the MXU -----
    lane = jax.lax.broadcasted_iota(jnp.int32, (T, B * VP), 1)
    tok = tok_ref[...]                                          # [T, B] int32
    tok_b = jnp.where(lane < VP, tok[:, 0:1], tok[:, 1:2])      # token id per lane block
    onehot = (lane % VP == tok_b).astype(jnp.bfloat16)          # [T, 256]
    x_emb = jnp.dot(onehot, emb_ref[...],
                    preferred_element_type=jnp.float32)         # [T, BE]

    # ---- FiLM style conditioning: single packed matmul, gamma|beta lane-split --
    film = jnp.dot(st_ref[...], wgb_ref[...],
                   preferred_element_type=jnp.float32) + bgb_ref[...]   # [1, 2*BE]
    x = film[:, :BE] * x_emb + film[:, BE:]                     # [T, BE]

    # ---- forward branch: 3 SSM ("mamba") blocks collapsed offline --------------
    # TODO(synk): OptimizedSSMBlock is not defined in the reference source; stood
    # in by a deterministic linear causal SSM; the 3-layer chain is collapsed
    # exactly into one [T,T] operator M.  Its broadcast (rank-1 over E) update is
    # folded into extra rows of the fusion weight, so only y = M @ x is needed.
    y = jnp.dot(m_ref[...], x, preferred_element_type=jnp.float32)      # [T, BE]

    # ---- backward branch: dilated grouped convs (+ fused pointwise) ------------
    # One K-stacked matmul over all 9 unique time shifts (row-only causal mask).
    t_idx = jax.lax.broadcasted_iota(jnp.int32, (T, 1), 0)
    pieces = []
    for s in SHIFTS:
        rolled = x if s == 0 else pltpu.roll(x, (-s) % T, axis=0)
        valid = jnp.logical_and(t_idx + s >= 0, t_idx + s < T)          # [T, 1]
        pieces.append(jnp.where(valid, rolled, 0.0))
    xs_all = jnp.concatenate(pieces, axis=-1).astype(jnp.bfloat16)      # [T, 9*BE]
    conv = jnp.dot(xs_all, wtap_ref[...],
                   preferred_element_type=jnp.float32) + beff_ref[...]  # [T, BE]

    # ---- LayerNorm over E (each batch is one 64-lane half), two-pass variance --
    bw = conv + x
    half0 = jax.lax.broadcasted_iota(jnp.int32, (1, BE), 1) < E
    sgn = jnp.where(half0, 1.0, -1.0)
    s_all = jnp.sum(bw, axis=-1, keepdims=True)
    s_dif = jnp.sum(bw * sgn, axis=-1, keepdims=True)
    mu = jnp.where(half0, (s_all + s_dif) * (1.0 / BE), (s_all - s_dif) * (1.0 / BE))
    xc = bw - mu
    v_all = jnp.sum(xc * xc, axis=-1, keepdims=True)
    v_dif = jnp.sum(xc * xc * sgn, axis=-1, keepdims=True)
    var = jnp.where(half0, (v_all + v_dif) * (1.0 / BE), (v_all - v_dif) * (1.0 / BE))
    bw_n = xc * jax.lax.rsqrt(var + LN_EPS)    # LN affine folded into w1/b1 offline

    # ---- fusion MLP: [16,384]@[384,256] (x | bw | y rows), SiLU, output proj ---
    comb = jnp.concatenate([x, bw_n, y], axis=-1).astype(jnp.bfloat16)  # [T, 3*BE]
    h = jnp.dot(comb, w1_ref[...], preferred_element_type=jnp.float32) + b1_ref[...]
    h = h * jax.nn.sigmoid(h)                  # SiLU; Dropout(0.1) identity at inference
    out = jnp.dot(h.astype(jnp.bfloat16), w2_ref[...],
                  preferred_element_type=jnp.float32) + b2_ref[...]     # [T, BE]
    out_ref[...] = out


def build_params(key):
    keys = jax.random.split(key, 16)
    init = lambda k, shape, s=0.05: (s * jax.random.normal(k, shape)).astype(jnp.float32)
    p = {}
    p["emb"] = init(keys[0], (VOCAB, E), 0.1)                     # token_embedding
    p["wf"] = init(keys[1], (STYLE, 2 * E))                       # style_to_film
    p["bf"] = init(keys[2], (1, 2 * E))

    # SSM surrogate coefficients -> causal [T, T] matrices; collapse the 3-layer
    # chain into M = A1 + A2(I+A1) + A3(I+A2)(I+A1).
    amats = []
    for l in range(N_SSM):
        a, b_c, c_c, d_c = 0.8 + 0.05 * l, 0.5, 1.0, 0.25
        idx = np.arange(T)
        powers = np.where(idx[:, None] >= idx[None, :],
                          a ** (idx[:, None] - idx[None, :]), 0.0)
        amats.append(b_c * c_c * powers + d_c * np.eye(T))
    amats = np.stack(amats).astype(np.float32)
    p["amat"] = jnp.asarray(amats)                                # reference uses these
    eye = np.eye(T, dtype=np.float32)
    m_time = (amats[0]
              + amats[1] @ (eye + amats[0])
              + amats[2] @ (eye + amats[1]) @ (eye + amats[0]))

    # grouped dilated conv weights -> block-diagonal dense [4, 3, E, E4]
    gsz_in = E // 4        # in-channels per group
    gsz_out = E4 // 4      # out-channels per group
    wc_dense = np.zeros((4, 3, E, E4), np.float32)
    bc = np.zeros((4, 1, E4), np.float32)
    for l in range(4):
        wl = np.asarray(init(keys[3 + l], (E4, gsz_in, 3)))       # torch grouped layout
        bc[l, 0, :] = np.asarray(init(keys[7 + l], (E4,)))
        for g in range(4):
            o0, o1 = g * gsz_out, (g + 1) * gsz_out
            i0, i1 = g * gsz_in, (g + 1) * gsz_in
            for k in range(3):
                wc_dense[l, k, i0:i1, o0:o1] = wl[o0:o1, :, k].T
    p["wc"] = jnp.asarray(wc_dense)
    p["bc"] = jnp.asarray(bc)
    p["wpt"] = init(keys[11], (E, E))                             # backward_pointwise [in, out]
    p["bp"] = init(keys[12], (1, E))

    # Fold the pointwise conv into the dilated taps and group by unique time shift.
    wpt_np = np.asarray(p["wpt"])
    bp_np = np.asarray(p["bp"])
    w_taps = np.zeros((len(SHIFTS), E, E), np.float32)
    b_eff = bp_np.copy()
    for l, d in enumerate(DILS):
        wpt_blk = wpt_np[l * E4:(l + 1) * E4, :]                  # [E4, E]
        b_eff = b_eff + bc[l] @ wpt_blk
        for k in range(3):
            s = (k - 1) * d
            w_taps[SHIFTS.index(s)] += wc_dense[l, k] @ wpt_blk

    p["lng"] = jnp.ones((1, E), jnp.float32)                      # backward_norm
    p["lnb"] = jnp.zeros((1, E), jnp.float32)
    p["w1"] = init(keys[13], (2 * E, HID))                        # fusion
    p["b1"] = init(keys[14], (1, HID))
    p["w2"] = init(keys[15], (HID, E))
    p["b2"] = jnp.zeros((1, E), jnp.float32)

    # ================== packed (batch-in-lanes) kernel weights ==================
    def blockdiag(w):
        k, n = w.shape
        out = np.zeros((B * k, B * n), np.float32)
        for b in range(B):
            out[b * k:(b + 1) * k, b * n:(b + 1) * n] = w
        return out

    # one-hot embedding table, padded vocab, duplicated per batch block
    emb_pad = np.zeros((VP, E), np.float32)
    emb_pad[:VOCAB] = np.asarray(p["emb"])
    p["emb_bd"] = jnp.asarray(blockdiag(emb_pad)).astype(jnp.bfloat16)      # [256, 128]

    # packed FiLM: style_packed[1, B*STYLE] @ wgb -> [gamma_packed | beta_packed]
    wf_np, bf_np = np.asarray(p["wf"]), np.asarray(p["bf"])
    wgb = np.zeros((B * STYLE, 2 * BE), np.float32)
    bgb = np.zeros((1, 2 * BE), np.float32)
    for b in range(B):
        wgb[b * STYLE:(b + 1) * STYLE, b * E:(b + 1) * E] = wf_np[:, :E]
        wgb[b * STYLE:(b + 1) * STYLE, BE + b * E:BE + (b + 1) * E] = wf_np[:, E:]
        bgb[0, b * E:(b + 1) * E] = bf_np[0, :E]
        bgb[0, BE + b * E:BE + (b + 1) * E] = bf_np[0, E:]
    p["wgb"] = jnp.asarray(wgb).astype(jnp.bfloat16)                        # [64, 256]
    p["bgb"] = jnp.asarray(bgb)                                             # [1, 256]

    p["m_time"] = jnp.asarray(m_time)                                       # [16, 16] f32

    # conv taps: per shift block-diag over batch, stacked along K
    p["wtaps_bd"] = jnp.asarray(
        np.concatenate([blockdiag(w_taps[i]) for i in range(len(SHIFTS))], axis=0)
    ).astype(jnp.bfloat16)                                                  # [1152, 128]
    p["beff_p"] = jnp.asarray(np.tile(b_eff, (1, B)))                       # [1, 128]

    # fusion layer 1 with (a) LN affine folded in, (b) SSM rank-1 fold rows (y@G)
    w1_np, b1_np = np.asarray(p["w1"]), np.asarray(p["b1"])
    lng_np, lnb_np = np.asarray(p["lng"]), np.asarray(p["lnb"])
    w1a = w1_np[:E, :]                                    # forward-feature rows
    w1b = lng_np.reshape(E, 1) * w1_np[E:, :]             # LN gamma folded
    b1_eff = b1_np + lnb_np @ w1_np[E:, :]                # LN beta folded
    colsum = w1a.sum(axis=0)                              # rank-1 fold of broadcast SSM
    w1_ext = np.zeros((3 * BE, B * HID), np.float32)
    b1_p = np.zeros((1, B * HID), np.float32)
    for b in range(B):
        w1_ext[b * E:(b + 1) * E, b * HID:(b + 1) * HID] = w1a
        w1_ext[BE + b * E:BE + (b + 1) * E, b * HID:(b + 1) * HID] = w1b
        w1_ext[2 * BE + b * E:2 * BE + (b + 1) * E, b * HID:(b + 1) * HID] = \
            np.tile(colsum[None, :] / E, (E, 1))
        b1_p[0, b * HID:(b + 1) * HID] = b1_eff[0]
    p["w1_ext"] = jnp.asarray(w1_ext).astype(jnp.bfloat16)                  # [384, 256]
    p["b1_p"] = jnp.asarray(b1_p)                                           # [1, 256]

    p["w2_bd"] = jnp.asarray(blockdiag(np.asarray(p["w2"]))).astype(jnp.bfloat16)  # [256,128]
    p["b2_p"] = jnp.asarray(np.tile(np.asarray(p["b2"]), (1, B)))           # [1, 128]
    return p


@jax.jit
def mamba_conv_text_encoder(tokens, style, p):
    # Single gridless pallas_call; all packing of inputs is trivial glue
    # (tiny transpose of the int token ids, free reshape of the style rows).
    tok_packed = tokens.T.astype(jnp.int32)                    # [T, B]
    style_packed = style.reshape(1, B * STYLE).astype(jnp.bfloat16)
    out = pl.pallas_call(
        encoder_kernel,
        out_shape=jax.ShapeDtypeStruct((T, BE), jnp.float32),  # lane-dense [16, 128]
    )(tok_packed, style_packed, p["emb_bd"], p["wgb"], p["bgb"], p["m_time"],
      p["wtaps_bd"], p["beff_p"], p["w1_ext"], p["b1_p"], p["w2_bd"], p["b2_p"])
    return out.reshape(T, B, E).transpose(1, 0, 2)             # [B, T, E]


def reference(tokens, style, p):
    """Pure-JAX f32 mirror of the PyTorch forward (same surrogate SSM, unfused weights)."""
    x = jnp.take(p["emb"], tokens, axis=0)
    film = style @ p["wf"] + p["bf"]
    gamma, beta = film[:, :E], film[:, E:]
    x = gamma[:, None, :] * x + beta[:, None, :]
    ff = x
    for l in range(N_SSM):
        u = ff.mean(-1, keepdims=True)
        ff = ff + jnp.einsum("ts,bsz->btz", p["amat"][l], u)
    xpad = jnp.pad(x, ((0, 0), (PAD, PAD), (0, 0)))
    acc = jnp.zeros((tokens.shape[0], T, E), jnp.float32) + p["bp"]
    for l, d in enumerate(DILS):
        yl = jnp.zeros((tokens.shape[0], T, E4), jnp.float32) + p["bc"][l]
        for k in range(3):
            s0 = PAD + (k - 1) * d
            yl = yl + xpad[:, s0:s0 + T, :] @ p["wc"][l, k]
        acc = acc + yl @ p["wpt"][l * E4:(l + 1) * E4, :]
    bw = acc + x
    mu = bw.mean(-1, keepdims=True)
    var = ((bw - mu) ** 2).mean(-1, keepdims=True)
    bw = (bw - mu) / jnp.sqrt(var + LN_EPS) * p["lng"] + p["lnb"]
    comb = jnp.concatenate([ff, bw], -1)
    h = comb @ p["w1"] + p["b1"]
    h = h * jax.nn.sigmoid(h)
    return h @ p["w2"] + p["b2"]


if __name__ == "__main__":
    key = jax.random.PRNGKey(0)
    kp, kt, ks = jax.random.split(key, 3)
    params = build_params(kp)
    tokens = jax.random.randint(kt, (B, T), 0, VOCAB, dtype=jnp.int32)
    style = (0.1 * jax.random.normal(ks, (B, STYLE))).astype(jnp.float32)

    out = mamba_conv_text_encoder(tokens, style, params)
    out = jax.block_until_ready(out)
    assert out.shape == (B, T, E)

    ref = reference(tokens, style, params)
    np.testing.assert_allclose(np.asarray(out), np.asarray(ref), rtol=2e-2, atol=2e-2)
    print("KERNEL_OK")
</pallas_src>

<mosaic_0001>
module attributes {stable_mosaic.version = 11 : i64} {
  func.func @encoder_kernel(%arg0: memref<16x2xi32, #tpu.memory_space<vmem>>, %arg1: memref<1x64xbf16, #tpu.memory_space<vmem>>, %arg2: memref<256x128xbf16, #tpu.memory_space<vmem>>, %arg3: memref<64x256xbf16, #tpu.memory_space<vmem>>, %arg4: memref<1x256xf32, #tpu.memory_space<vmem>>, %arg5: memref<16x16xf32, #tpu.memory_space<vmem>>, %arg6: memref<1152x128xbf16, #tpu.memory_space<vmem>>, %arg7: memref<1x128xf32, #tpu.memory_space<vmem>>, %arg8: memref<384x256xbf16, #tpu.memory_space<vmem>>, %arg9: memref<1x256xf32, #tpu.memory_space<vmem>>, %arg10: memref<256x128xbf16, #tpu.memory_space<vmem>>, %arg11: memref<1x128xf32, #tpu.memory_space<vmem>>, %arg12: memref<16x128xf32, #tpu.memory_space<vmem>>) attributes {dimension_semantics = [], scalar_prefetch = 0 : i64, scratch_operands = 0 : i64, tpu.core_type = #tpu.core_type<tc>} {
    %0 = tpu.iota {dimensions = array<i32: 1>} : vector<16x256xi32>
    %c0 = arith.constant 0 : index
    %c0_0 = arith.constant 0 : index
    %1 = vector.load %arg0[%c0, %c0_0] : memref<16x2xi32, #tpu.memory_space<vmem>>, vector<16x2xi32>
    %c128_i32 = arith.constant 128 : i32
    %2 = vector.broadcast %c128_i32 : i32 to vector<16x256xi32>
    %3 = arith.cmpi slt, %0, %2 : vector<16x256xi32>
    %4 = vector.extract_strided_slice %1 {offsets = [0, 0], sizes = [16, 1], strides = [1, 1]} : vector<16x2xi32> to vector<16x1xi32>
    %5 = vector.extract_strided_slice %1 {offsets = [0, 1], sizes = [16, 1], strides = [1, 1]} : vector<16x2xi32> to vector<16x1xi32>
    %6 = vector.shape_cast %4 : vector<16x1xi32> to vector<16x1xi32>
    %7 = vector.broadcast %6 : vector<16x1xi32> to vector<16x256xi32>
    %8 = vector.shape_cast %5 : vector<16x1xi32> to vector<16x1xi32>
    %9 = vector.broadcast %8 : vector<16x1xi32> to vector<16x256xi32>
    %10 = arith.select %3, %7, %9 : vector<16x256xi1>, vector<16x256xi32>
    %c128_i32_1 = arith.constant 128 : i32
    %c0_i32 = arith.constant 0 : i32
    %11 = arith.cmpi eq, %c128_i32_1, %c0_i32 : i32
    %c1_i32 = arith.constant 1 : i32
    %12 = arith.select %11, %c1_i32, %c128_i32_1 : i32
    %13 = vector.broadcast %12 : i32 to vector<16x256xi32>
    %14 = arith.remsi %0, %13 : vector<16x256xi32>
    %c0_i32_2 = arith.constant 0 : i32
    %15 = vector.broadcast %c0_i32_2 : i32 to vector<16x256xi32>
    %16 = arith.cmpi ne, %14, %15 : vector<16x256xi32>
    %c0_i32_3 = arith.constant 0 : i32
    %17 = vector.broadcast %c0_i32_3 : i32 to vector<16x256xi32>
    %18 = arith.cmpi slt, %14, %17 : vector<16x256xi32>
    %c0_i32_4 = arith.constant 0 : i32
    %19 = arith.cmpi slt, %12, %c0_i32_4 : i32
    %20 = vector.broadcast %19 : i1 to vector<16x256xi1>
    %21 = vector.broadcast %20 : vector<16x256xi1> to vector<16x256xi1>
    %22 = arith.xori %18, %21 : vector<16x256xi1>
    %23 = arith.andi %22, %16 : vector<16x256xi1>
    %24 = vector.broadcast %12 : i32 to vector<16x256xi32>
    %25 = arith.addi %14, %24 : vector<16x256xi32>
    %26 = arith.select %23, %25, %14 : vector<16x256xi1>, vector<16x256xi32>
    %27 = arith.cmpi eq, %26, %10 : vector<16x256xi32>
    %28 = arith.extui %27 : vector<16x256xi1> to vector<16x256xi32>
    %29 = arith.sitofp %28 : vector<16x256xi32> to vector<16x256xf32>
    %30 = arith.truncf %29 : vector<16x256xf32> to vector<16x256xbf16>
    %c0_5 = arith.constant 0 : index
    %c0_6 = arith.constant 0 : index
    %31 = vector.load %arg2[%c0_5, %c0_6] : memref<256x128xbf16, #tpu.memory_space<vmem>>, vector<256x128xbf16>
    %cst = arith.constant dense<0.000000e+00> : vector<16x128xf32>
    %32 = tpu.matmul %30, %31, %cst {dimension_numbers = #tpu.dot_dimension_numbers<[1], [0], [0], [1], [0, 0, 1, 1], [], []>} : vector<16x256xbf16>, vector<256x128xbf16>, vector<16x128xf32> -> vector<16x128xf32>
    %c0_7 = arith.constant 0 : index
    %c0_8 = arith.constant 0 : index
    %33 = vector.load %arg1[%c0_7, %c0_8] : memref<1x64xbf16, #tpu.memory_space<vmem>>, vector<1x64xbf16>
    %c0_9 = arith.constant 0 : index
    %c0_10 = arith.constant 0 : index
    %34 = vector.load %arg3[%c0_9, %c0_10] : memref<64x256xbf16, #tpu.memory_space<vmem>>, vector<64x256xbf16>
    %cst_11 = arith.constant dense<0.000000e+00> : vector<1x256xf32>
    %35 = tpu.matmul %33, %34, %cst_11 {dimension_numbers = #tpu.dot_dimension_numbers<[1], [0], [0], [1], [0, 0, 1, 1], [], []>} : vector<1x64xbf16>, vector<64x256xbf16>, vector<1x256xf32> -> vector<1x256xf32>
    %c0_12 = arith.constant 0 : index
    %c0_13 = arith.constant 0 : index
    %36 = vector.load %arg4[%c0_12, %c0_13] : memref<1x256xf32, #tpu.memory_space<vmem>>, vector<1x256xf32>
    %37 = arith.addf %35, %36 : vector<1x256xf32>
    %38 = vector.extract_strided_slice %37 {offsets = [0, 0], sizes = [1, 128], strides = [1, 1]} : vector<1x256xf32> to vector<1x128xf32>
    %39 = vector.broadcast %38 : vector<1x128xf32> to vector<16x128xf32>
    %40 = arith.mulf %39, %32 : vector<16x128xf32>
    %41 = vector.extract_strided_slice %37 {offsets = [0, 128], sizes = [1, 128], strides = [1, 1]} : vector<1x256xf32> to vector<1x128xf32>
    %42 = vector.broadcast %41 : vector<1x128xf32> to vector<16x128xf32>
    %43 = arith.addf %40, %42 : vector<16x128xf32>
    %c0_14 = arith.constant 0 : index
    %c0_15 = arith.constant 0 : index
    %44 = vector.load %arg5[%c0_14, %c0_15] : memref<16x16xf32, #tpu.memory_space<vmem>>, vector<16x16xf32>
    %cst_16 = arith.constant dense<0.000000e+00> : vector<16x128xf32>
    %45 = tpu.matmul %44, %43, %cst_16 {dimension_numbers = #tpu.dot_dimension_numbers<[1], [0], [0], [1], [0, 0, 1, 1], [], []>} : vector<16x16xf32>, vector<16x128xf32>, vector<16x128xf32> -> vector<16x128xf32>
    %46 = tpu.iota {dimensions = array<i32: 0>} : vector<16x1xi32>
    %c8_i32 = arith.constant 8 : i32
    %47 = tpu.dynamic_rotate %43 by %c8_i32 dim 0 : vector<16x128xf32>, i32 -> vector<16x128xf32>
    %c-8_i32 = arith.constant -8 : i32
    %48 = vector.broadcast %c-8_i32 : i32 to vector<16x1xi32>
    %49 = arith.addi %46, %48 : vector<16x1xi32>
    %c0_i32_17 = arith.constant 0 : i32
    %50 = vector.broadcast %c0_i32_17 : i32 to vector<16x1xi32>
    %51 = arith.cmpi sge, %49, %50 : vector<16x1xi32>
    %c-8_i32_18 = arith.constant -8 : i32
    %52 = vector.broadcast %c-8_i32_18 : i32 to vector<16x1xi32>
    %53 = arith.addi %46, %52 : vector<16x1xi32>
    %c16_i32 = arith.constant 16 : i32
    %54 = vector.broadcast %c16_i32 : i32 to vector<16x1xi32>
    %55 = arith.cmpi slt, %53, %54 : vector<16x1xi32>
    %56 = arith.andi %51, %55 : vector<16x1xi1>
    %cst_19 = arith.constant 0.000000e+00 : f32
    %57 = vector.shape_cast %56 : vector<16x1xi1> to vector<16x1xi1>
    %58 = vector.broadcast %57 : vector<16x1xi1> to vector<16x128xi1>
    %59 = vector.broadcast %cst_19 : f32 to vector<16x128xf32>
    %60 = arith.select %58, %47, %59 : vector<16x128xi1>, vector<16x128xf32>
    %c4_i32 = arith.constant 4 : i32
    %61 = tpu.dynamic_rotate %43 by %c4_i32 dim 0 : vector<16x128xf32>, i32 -> vector<16x128xf32>
    %c-4_i32 = arith.constant -4 : i32
    %62 = vector.broadcast %c-4_i32 : i32 to vector<16x1xi32>
    %63 = arith.addi %46, %62 : vector<16x1xi32>
    %c0_i32_20 = arith.constant 0 : i32
    %64 = vector.broadcast %c0_i32_20 : i32 to vector<16x1xi32>
    %65 = arith.cmpi sge, %63, %64 : vector<16x1xi32>
    %c-4_i32_21 = arith.constant -4 : i32
    %66 = vector.broadcast %c-4_i32_21 : i32 to vector<16x1xi32>
    %67 = arith.addi %46, %66 : vector<16x1xi32>
    %c16_i32_22 = arith.constant 16 : i32
    %68 = vector.broadcast %c16_i32_22 : i32 to vector<16x1xi32>
    %69 = arith.cmpi slt, %67, %68 : vector<16x1xi32>
    %70 = arith.andi %65, %69 : vector<16x1xi1>
    %cst_23 = arith.constant 0.000000e+00 : f32
    %71 = vector.shape_cast %70 : vector<16x1xi1> to vector<16x1xi1>
    %72 = vector.broadcast %71 : vector<16x1xi1> to vector<16x128xi1>
    %73 = vector.broadcast %cst_23 : f32 to vector<16x128xf32>
    %74 = arith.select %72, %61, %73 : vector<16x128xi1>, vector<16x128xf32>
    %c2_i32 = arith.constant 2 : i32
    %75 = tpu.dynamic_rotate %43 by %c2_i32 dim 0 : vector<16x128xf32>, i32 -> vector<16x128xf32>
    %c-2_i32 = arith.constant -2 : i32
    %76 = vector.broadcast %c-2_i32 : i32 to vector<16x1xi32>
    %77 = arith.addi %46, %76 : vector<16x1xi32>
    %c0_i32_24 = arith.constant 0 : i32
    %78 = vector.broadcast %c0_i32_24 : i32 to vector<16x1xi32>
    %79 = arith.cmpi sge, %77, %78 : vector<16x1xi32>
    %c-2_i32_25 = arith.constant -2 : i32
    %80 = vector.broadcast %c-2_i32_25 : i32 to vector<16x1xi32>
    %81 = arith.addi %46, %80 : vector<16x1xi32>
    %c16_i32_26 = arith.constant 16 : i32
    %82 = vector.broadcast %c16_i32_26 : i32 to vector<16x1xi32>
    %83 = arith.cmpi slt, %81, %82 : vector<16x1xi32>
    %84 = arith.andi %79, %83 : vector<16x1xi1>
    %cst_27 = arith.constant 0.000000e+00 : f32
    %85 = vector.shape_cast %84 : vector<16x1xi1> to vector<16x1xi1>
    %86 = vector.broadcast %85 : vector<16x1xi1> to vector<16x128xi1>
    %87 = vector.broadcast %cst_27 : f32 to vector<16x128xf32>
    %88 = arith.select %86, %75, %87 : vector<16x128xi1>, vector<16x128xf32>
    %c1_i32_28 = arith.constant 1 : i32
    %89 = tpu.dynamic_rotate %43 by %c1_i32_28 dim 0 : vector<16x128xf32>, i32 -> vector<16x128xf32>
    %c-1_i32 = arith.constant -1 : i32
    %90 = vector.broadcast %c-1_i32 : i32 to vector<16x1xi32>
    %91 = arith.addi %46, %90 : vector<16x1xi32>
    %c0_i32_29 = arith.constant 0 : i32
    %92 = vector.broadcast %c0_i32_29 : i32 to vector<16x1xi32>
    %93 = arith.cmpi sge, %91, %92 : vector<16x1xi32>
    %c-1_i32_30 = arith.constant -1 : i32
    %94 = vector.broadcast %c-1_i32_30 : i32 to vector<16x1xi32>
    %95 = arith.addi %46, %94 : vector<16x1xi32>
    %c16_i32_31 = arith.constant 16 : i32
    %96 = vector.broadcast %c16_i32_31 : i32 to vector<16x1xi32>
    %97 = arith.cmpi slt, %95, %96 : vector<16x1xi32>
    %98 = arith.andi %93, %97 : vector<16x1xi1>
    %cst_32 = arith.constant 0.000000e+00 : f32
    %99 = vector.shape_cast %98 : vector<16x1xi1> to vector<16x1xi1>
    %100 = vector.broadcast %99 : vector<16x1xi1> to vector<16x128xi1>
    %101 = vector.broadcast %cst_32 : f32 to vector<16x128xf32>
    %102 = arith.select %100, %89, %101 : vector<16x128xi1>, vector<16x128xf32>
    %c0_i32_33 = arith.constant 0 : i32
    %103 = vector.broadcast %c0_i32_33 : i32 to vector<16x1xi32>
    %104 = arith.addi %46, %103 : vector<16x1xi32>
    %c0_i32_34 = arith.constant 0 : i32
    %105 = vector.broadcast %c0_i32_34 : i32 to vector<16x1xi32>
    %106 = arith.cmpi sge, %104, %105 : vector<16x1xi32>
    %c0_i32_35 = arith.constant 0 : i32
    %107 = vector.broadcast %c0_i32_35 : i32 to vector<16x1xi32>
    %108 = arith.addi %46, %107 : vector<16x1xi32>
    %c16_i32_36 = arith.constant 16 : i32
    %109 = vector.broadcast %c16_i32_36 : i32 to vector<16x1xi32>
    %110 = arith.cmpi slt, %108, %109 : vector<16x1xi32>
    %111 = arith.andi %106, %110 : vector<16x1xi1>
    %cst_37 = arith.constant 0.000000e+00 : f32
    %112 = vector.shape_cast %111 : vector<16x1xi1> to vector<16x1xi1>
    %113 = vector.broadcast %112 : vector<16x1xi1> to vector<16x128xi1>
    %114 = vector.broadcast %cst_37 : f32 to vector<16x128xf32>
    %115 = arith.select %113, %43, %114 : vector<16x128xi1>, vector<16x128xf32>
    %c15_i32 = arith.constant 15 : i32
    %116 = tpu.dynamic_rotate %43 by %c15_i32 dim 0 : vector<16x128xf32>, i32 -> vector<16x128xf32>
    %c1_i32_38 = arith.constant 1 : i32
    %117 = vector.broadcast %c1_i32_38 : i32 to vector<16x1xi32>
    %118 = arith.addi %46, %117 : vector<16x1xi32>
    %c0_i32_39 = arith.constant 0 : i32
    %119 = vector.broadcast %c0_i32_39 : i32 to vector<16x1xi32>
    %120 = arith.cmpi sge, %118, %119 : vector<16x1xi32>
    %c1_i32_40 = arith.constant 1 : i32
    %121 = vector.broadcast %c1_i32_40 : i32 to vector<16x1xi32>
    %122 = arith.addi %46, %121 : vector<16x1xi32>
    %c16_i32_41 = arith.constant 16 : i32
    %123 = vector.broadcast %c16_i32_41 : i32 to vector<16x1xi32>
    %124 = arith.cmpi slt, %122, %123 : vector<16x1xi32>
    %125 = arith.andi %120, %124 : vector<16x1xi1>
    %cst_42 = arith.constant 0.000000e+00 : f32
    %126 = vector.shape_cast %125 : vector<16x1xi1> to vector<16x1xi1>
    %127 = vector.broadcast %126 : vector<16x1xi1> to vector<16x128xi1>
    %128 = vector.broadcast %cst_42 : f32 to vector<16x128xf32>
    %129 = arith.select %127, %116, %128 : vector<16x128xi1>, vector<16x128xf32>
    %c14_i32 = arith.constant 14 : i32
    %130 = tpu.dynamic_rotate %43 by %c14_i32 dim 0 : vector<16x128xf32>, i32 -> vector<16x128xf32>
    %c2_i32_43 = arith.constant 2 : i32
    %131 = vector.broadcast %c2_i32_43 : i32 to vector<16x1xi32>
    %132 = arith.addi %46, %131 : vector<16x1xi32>
    %c0_i32_44 = arith.constant 0 : i32
    %133 = vector.broadcast %c0_i32_44 : i32 to vector<16x1xi32>
    %134 = arith.cmpi sge, %132, %133 : vector<16x1xi32>
    %c2_i32_45 = arith.constant 2 : i32
    %135 = vector.broadcast %c2_i32_45 : i32 to vector<16x1xi32>
    %136 = arith.addi %46, %135 : vector<16x1xi32>
    %c16_i32_46 = arith.constant 16 : i32
    %137 = vector.broadcast %c16_i32_46 : i32 to vector<16x1xi32>
    %138 = arith.cmpi slt, %136, %137 : vector<16x1xi32>
    %139 = arith.andi %134, %138 : vector<16x1xi1>
    %cst_47 = arith.constant 0.000000e+00 : f32
    %140 = vector.shape_cast %139 : vector<16x1xi1> to vector<16x1xi1>
    %141 = vector.broadcast %140 : vector<16x1xi1> to vector<16x128xi1>
    %142 = vector.broadcast %cst_47 : f32 to vector<16x128xf32>
    %143 = arith.select %141, %130, %142 : vector<16x128xi1>, vector<16x128xf32>
    %c12_i32 = arith.constant 12 : i32
    %144 = tpu.dynamic_rotate %43 by %c12_i32 dim 0 : vector<16x128xf32>, i32 -> vector<16x128xf32>
    %c4_i32_48 = arith.constant 4 : i32
    %145 = vector.broadcast %c4_i32_48 : i32 to vector<16x1xi32>
    %146 = arith.addi %46, %145 : vector<16x1xi32>
    %c0_i32_49 = arith.constant 0 : i32
    %147 = vector.broadcast %c0_i32_49 : i32 to vector<16x1xi32>
    %148 = arith.cmpi sge, %146, %147 : vector<16x1xi32>
    %c4_i32_50 = arith.constant 4 : i32
    %149 = vector.broadcast %c4_i32_50 : i32 to vector<16x1xi32>
    %150 = arith.addi %46, %149 : vector<16x1xi32>
    %c16_i32_51 = arith.constant 16 : i32
    %151 = vector.broadcast %c16_i32_51 : i32 to vector<16x1xi32>
    %152 = arith.cmpi slt, %150, %151 : vector<16x1xi32>
    %153 = arith.andi %148, %152 : vector<16x1xi1>
    %cst_52 = arith.constant 0.000000e+00 : f32
    %154 = vector.shape_cast %153 : vector<16x1xi1> to vector<16x1xi1>
    %155 = vector.broadcast %154 : vector<16x1xi1> to vector<16x128xi1>
    %156 = vector.broadcast %cst_52 : f32 to vector<16x128xf32>
    %157 = arith.select %155, %144, %156 : vector<16x128xi1>, vector<16x128xf32>
    %c8_i32_53 = arith.constant 8 : i32
    %158 = tpu.dynamic_rotate %43 by %c8_i32_53 dim 0 : vector<16x128xf32>, i32 -> vector<16x128xf32>
    %c8_i32_54 = arith.constant 8 : i32
    %159 = vector.broadcast %c8_i32_54 : i32 to vector<16x1xi32>
    %160 = arith.addi %46, %159 : vector<16x1xi32>
    %c0_i32_55 = arith.constant 0 : i32
    %161 = vector.broadcast %c0_i32_55 : i32 to vector<16x1xi32>
    %162 = arith.cmpi sge, %160, %161 : vector<16x1xi32>
    %c8_i32_56 = arith.constant 8 : i32
    %163 = vector.broadcast %c8_i32_56 : i32 to vector<16x1xi32>
    %164 = arith.addi %46, %163 : vector<16x1xi32>
    %c16_i32_57 = arith.constant 16 : i32
    %165 = vector.broadcast %c16_i32_57 : i32 to vector<16x1xi32>
    %166 = arith.cmpi slt, %164, %165 : vector<16x1xi32>
    %167 = arith.andi %162, %166 : vector<16x1xi1>
    %cst_58 = arith.constant 0.000000e+00 : f32
    %168 = vector.shape_cast %167 : vector<16x1xi1> to vector<16x1xi1>
    %169 = vector.broadcast %168 : vector<16x1xi1> to vector<16x128xi1>
    %170 = vector.broadcast %cst_58 : f32 to vector<16x128xf32>
    %171 = arith.select %169, %158, %170 : vector<16x128xi1>, vector<16x128xf32>
    %172 = tpu.concatenate %60, %74, %88, %102, %115, %129, %143, %157, %171 in 1 : vector<16x128xf32>, vector<16x128xf32>, vector<16x128xf32>, vector<16x128xf32>, vector<16x128xf32>, vector<16x128xf32>, vector<16x128xf32>, vector<16x128xf32>, vector<16x128xf32> -> vector<16x1152xf32>
    %173 = arith.truncf %172 : vector<16x1152xf32> to vector<16x1152xbf16>
    %c0_59 = arith.constant 0 : index
    %c0_60 = arith.constant 0 : index
    %174 = vector.load %arg6[%c0_59, %c0_60] : memref<1152x128xbf16, #tpu.memory_space<vmem>>, vector<1152x128xbf16>
    %cst_61 = arith.constant dense<0.000000e+00> : vector<16x128xf32>
    %175 = tpu.matmul %173, %174, %cst_61 {dimension_numbers = #tpu.dot_dimension_numbers<[1], [0], [0], [1], [0, 0, 1, 1], [], []>} : vector<16x1152xbf16>, vector<1152x128xbf16>, vector<16x128xf32> -> vector<16x128xf32>
    %c0_62 = arith.constant 0 : index
    %c0_63 = arith.constant 0 : index
    %176 = vector.load %arg7[%c0_62, %c0_63] : memref<1x128xf32, #tpu.memory_space<vmem>>, vector<1x128xf32>
    %177 = vector.broadcast %176 : vector<1x128xf32> to vector<16x128xf32>
    %178 = arith.addf %175, %177 : vector<16x128xf32>
    %179 = arith.addf %178, %43 : vector<16x128xf32>
    %180 = tpu.iota {dimensions = array<i32: 1>} : vector<1x128xi32>
    %c64_i32 = arith.constant 64 : i32
    %181 = vector.broadcast %c64_i32 : i32 to vector<1x128xi32>
    %182 = arith.cmpi slt, %180, %181 : vector<1x128xi32>
    %cst_64 = arith.constant 1.000000e+00 : f32
    %cst_65 = arith.constant -1.000000e+00 : f32
    %183 = vector.broadcast %cst_64 : f32 to vector<1x128xf32>
    %184 = vector.broadcast %cst_65 : f32 to vector<1x128xf32>
    %185 = arith.select %182, %183, %184 : vector<1x128xi1>, vector<1x128xf32>
    %cst_66 = arith.constant dense<0.000000e+00> : vector<16xf32>
    %186 = vector.multi_reduction <add>, %179, %cst_66 [1] : vector<16x128xf32> to vector<16xf32>
    %187 = vector.shape_cast %186 : vector<16xf32> to vector<16x1xf32>
    %188 = vector.broadcast %185 : vector<1x128xf32> to vector<16x128xf32>
    %189 = arith.mulf %179, %188 : vector<16x128xf32>
    %cst_67 = arith.constant dense<0.000000e+00> : vector<16xf32>
    %190 = vector.multi_reduction <add>, %189, %cst_67 [1] : vector<16x128xf32> to vector<16xf32>
    %191 = vector.shape_cast %190 : vector<16xf32> to vector<16x1xf32>
    %192 = arith.addf %187, %191 : vector<16x1xf32>
    %cst_68 = arith.constant 7.812500e-03 : f32
    %193 = vector.broadcast %cst_68 : f32 to vector<16x1xf32>
    %194 = arith.mulf %192, %193 : vector<16x1xf32>
    %195 = arith.subf %187, %191 : vector<16x1xf32>
    %cst_69 = arith.constant 7.812500e-03 : f32
    %196 = vector.broadcast %cst_69 : f32 to vector<16x1xf32>
    %197 = arith.mulf %195, %196 : vector<16x1xf32>
    %198 = vector.shape_cast %182 : vector<1x128xi1> to vector<1x128xi1>
    %199 = vector.broadcast %198 : vector<1x128xi1> to vector<16x128xi1>
    %200 = vector.shape_cast %194 : vector<16x1xf32> to vector<16x1xf32>
    %201 = vector.broadcast %200 : vector<16x1xf32> to vector<16x128xf32>
    %202 = vector.shape_cast %197 : vector<16x1xf32> to vector<16x1xf32>
    %203 = vector.broadcast %202 : vector<16x1xf32> to vector<16x128xf32>
    %204 = arith.select %199, %201, %203 : vector<16x128xi1>, vector<16x128xf32>
    %205 = arith.subf %179, %204 : vector<16x128xf32>
    %206 = arith.mulf %205, %205 : vector<16x128xf32>
    %cst_70 = arith.constant dense<0.000000e+00> : vector<16xf32>
    %207 = vector.multi_reduction <add>, %206, %cst_70 [1] : vector<16x128xf32> to vector<16xf32>
    %208 = vector.shape_cast %207 : vector<16xf32> to vector<16x1xf32>
    %209 = arith.mulf %205, %205 : vector<16x128xf32>
    %210 = vector.broadcast %185 : vector<1x128xf32> to vector<16x128xf32>
    %211 = arith.mulf %209, %210 : vector<16x128xf32>
    %cst_71 = arith.constant dense<0.000000e+00> : vector<16xf32>
    %212 = vector.multi_reduction <add>, %211, %cst_71 [1] : vector<16x128xf32> to vector<16xf32>
    %213 = vector.shape_cast %212 : vector<16xf32> to vector<16x1xf32>
    %214 = arith.addf %208, %213 : vector<16x1xf32>
    %cst_72 = arith.constant 7.812500e-03 : f32
    %215 = vector.broadcast %cst_72 : f32 to vector<16x1xf32>
    %216 = arith.mulf %214, %215 : vector<16x1xf32>
    %217 = arith.subf %208, %213 : vector<16x1xf32>
    %cst_73 = arith.constant 7.812500e-03 : f32
    %218 = vector.broadcast %cst_73 : f32 to vector<16x1xf32>
    %219 = arith.mulf %217, %218 : vector<16x1xf32>
    %220 = vector.shape_cast %182 : vector<1x128xi1> to vector<1x128xi1>
    %221 = vector.broadcast %220 : vector<1x128xi1> to vector<16x128xi1>
    %222 = vector.shape_cast %216 : vector<16x1xf32> to vector<16x1xf32>
    %223 = vector.broadcast %222 : vector<16x1xf32> to vector<16x128xf32>
    %224 = vector.shape_cast %219 : vector<16x1xf32> to vector<16x1xf32>
    %225 = vector.broadcast %224 : vector<16x1xf32> to vector<16x128xf32>
    %226 = arith.select %221, %223, %225 : vector<16x128xi1>, vector<16x128xf32>
    %cst_74 = arith.constant 9.99999974E-6 : f32
    %227 = vector.broadcast %cst_74 : f32 to vector<16x128xf32>
    %228 = arith.addf %226, %227 : vector<16x128xf32>
    %229 = math.rsqrt %228 : vector<16x128xf32>
    %230 = arith.mulf %205, %229 : vector<16x128xf32>
    %231 = tpu.concatenate %43, %230, %45 in 1 : vector<16x128xf32>, vector<16x128xf32>, vector<16x128xf32> -> vector<16x384xf32>
    %232 = arith.truncf %231 : vector<16x384xf32> to vector<16x384xbf16>
    %c0_75 = arith.constant 0 : index
    %c0_76 = arith.constant 0 : index
    %233 = vector.load %arg8[%c0_75, %c0_76] : memref<384x256xbf16, #tpu.memory_space<vmem>>, vector<384x256xbf16>
    %cst_77 = arith.constant dense<0.000000e+00> : vector<16x256xf32>
    %234 = tpu.matmul %232, %233, %cst_77 {dimension_numbers = #tpu.dot_dimension_numbers<[1], [0], [0], [1], [0, 0, 1, 1], [], []>} : vector<16x384xbf16>, vector<384x256xbf16>, vector<16x256xf32> -> vector<16x256xf32>
    %c0_78 = arith.constant 0 : index
    %c0_79 = arith.constant 0 : index
    %235 = vector.load %arg9[%c0_78, %c0_79] : memref<1x256xf32, #tpu.memory_space<vmem>>, vector<1x256xf32>
    %236 = vector.broadcast %235 : vector<1x256xf32> to vector<16x256xf32>
    %237 = arith.addf %234, %236 : vector<16x256xf32>
    %238 = arith.negf %237 : vector<16x256xf32>
    %239 = math.exp %238 : vector<16x256xf32>
    %cst_80 = arith.constant 1.000000e+00 : f32
    %240 = vector.broadcast %cst_80 : f32 to vector<16x256xf32>
    %241 = arith.addf %240, %239 : vector<16x256xf32>
    %242 = arith.divf %240, %241 : vector<16x256xf32>
    %243 = arith.mulf %237, %242 : vector<16x256xf32>
    %244 = arith.truncf %243 : vector<16x256xf32> to vector<16x256xbf16>
    %c0_81 = arith.constant 0 : index
    %c0_82 = arith.constant 0 : index
    %245 = vector.load %arg10[%c0_81, %c0_82] : memref<256x128xbf16, #tpu.memory_space<vmem>>, vector<256x128xbf16>
    %cst_83 = arith.constant dense<0.000000e+00> : vector<16x128xf32>
    %246 = tpu.matmul %244, %245, %cst_83 {dimension_numbers = #tpu.dot_dimension_numbers<[1], [0], [0], [1], [0, 0, 1, 1], [], []>} : vector<16x256xbf16>, vector<256x128xbf16>, vector<16x128xf32> -> vector<16x128xf32>
    %c0_84 = arith.constant 0 : index
    %c0_85 = arith.constant 0 : index
    %247 = vector.load %arg11[%c0_84, %c0_85] : memref<1x128xf32, #tpu.memory_space<vmem>>, vector<1x128xf32>
    %248 = vector.broadcast %247 : vector<1x128xf32> to vector<16x128xf32>
    %249 = arith.addf %246, %248 : vector<16x128xf32>
    %c0_86 = arith.constant 0 : index
    %c0_87 = arith.constant 0 : index
    %250 = vector.load %arg12[%c0_86, %c0_87] : memref<16x128xf32, #tpu.memory_space<vmem>>, vector<16x128xf32>
    tpu.vector_store %arg12[%c0_86, %c0_87], %249 {strides = array<i32>} : memref<16x128xf32, #tpu.memory_space<vmem>>, vector<16x128xf32>,
    return
  }
}

</mosaic_0001>

<llo_original>
// kernel: mamba_conv_text_encoder.1
$region0: #{mamba_conv_text_encoder.1}
  #allocation0 [shape = 'u32[]', space=smem, size = 0x4, offset = 0x4, fixed_abs, tag = 'smem constant byte address 0x4 - core index']
  #allocation1 [shape = 'u32[72,128]{1,0:T(1,128)}', space=vmem, size = 0x9000, scoped, tag = 'internal scratch']
  %s0 = inlined_call_operand.vmem [shape: s32[16,2], index: 0, kind: input, shape index: {}]
  %s1 = inlined_call_operand.vmem [shape: bf16[1,64], index: 1, kind: input, shape index: {}]
  %s2 = inlined_call_operand.hbm [shape: bf16[256,128], index: 2, kind: input, shape index: {}]
  %s3 = inlined_call_operand.hbm [shape: bf16[64,256], index: 3, kind: input, shape index: {}]
  %s4 = inlined_call_operand.vmem [shape: f32[1,256], index: 4, kind: input, shape index: {}]
  %s5 = inlined_call_operand.vmem [shape: f32[16,16], index: 5, kind: input, shape index: {}]
  %s6 = inlined_call_operand.hbm [shape: bf16[1152,128], index: 6, kind: input, shape index: {}]
  %s7 = inlined_call_operand.vmem [shape: f32[1,128], index: 7, kind: input, shape index: {}]
  %s8 = inlined_call_operand.hbm [shape: bf16[384,256], index: 8, kind: input, shape index: {}]
  %s9 = inlined_call_operand.vmem [shape: f32[1,256], index: 9, kind: input, shape index: {}]
  %s10 = inlined_call_operand.hbm [shape: bf16[256,128], index: 10, kind: input, shape index: {}]
  %s11 = inlined_call_operand.vmem [shape: f32[1,128], index: 11, kind: input, shape index: {}]
  %s12 = inlined_call_operand.vmem [shape: f32[16,128], index: 12, kind: output, shape index: {}]
  %s13 = sld [smem:[#allocation0]]
  $region78: #{mamba_conv_text_encoder.1} parent=0
    _
  %s15 = ssub.s32 1, %s13
  %s16 = scalar_select 0, %s15, %s13
  $region1: #{mamba_conv_text_encoder.1} parent=0
    #allocation2 [shape = 'u8[65536]{0}', space=vmem, size = 0x10000, scoped, tag = 'input window, operand 2, single buffered']
    #allocation3 [shape = 's32[1]{0}', space=sflag, size = 0x4, scoped, tag = 'scoped memory for mamba_conv_text_encoder.1']
    #allocation4 [shape = 'u8[32768]{0}', space=vmem, size = 0x8000, scoped, tag = 'input window, operand 3, single buffered']
    #allocation5 [shape = 's32[1]{0}', space=sflag, size = 0x4, scoped, tag = 'scoped memory for mamba_conv_text_encoder.1']
    #allocation6 [shape = 'u8[294912]{0}', space=vmem, size = 0x48000, scoped, tag = 'input window, operand 6, single buffered']
    #allocation7 [shape = 'u8[196608]{0}', space=vmem, size = 0x30000, scoped, tag = 'input window, operand 8, single buffered']
    #allocation8 [shape = 's32[1]{0}', space=sflag, size = 0x4, scoped, tag = 'scoped memory for mamba_conv_text_encoder.1']
    #allocation9 [shape = 'u8[65536]{0}', space=vmem, size = 0x10000, scoped, tag = 'input window, operand 10, single buffered']
    %17 = vsyncpa [#allocation3], 0
    %18 = vsyncpa [#allocation5], 0
    %19 = vsyncpa [#allocation8], 0
    // Predicated region
    $region2: #{mamba_conv_text_encoder.1} parent=1 // pred_check
      _
    $region3: #{mamba_conv_text_encoder.1} parent=1 // pred_check_branch
      %21 = sbr.rel (0) target = $region5
    $region4: #{mamba_conv_text_encoder.1} parent=1 // pred_region
      _
    $region5: #{mamba_conv_text_encoder.1} parent=1 // pred_fallthru
      _
    // Predicated region
    $region6: #{mamba_conv_text_encoder.1} parent=1 // pred_check
      _
    $region7: #{mamba_conv_text_encoder.1} parent=1 // pred_check_branch
      %23 = sbr.rel (0) target = $region9
    $region8: #{mamba_conv_text_encoder.1} parent=1 // pred_region
      _
    $region9: #{mamba_conv_text_encoder.1} parent=1 // pred_fallthru
      _
    // Predicated region
    $region10: #{mamba_conv_text_encoder.1} parent=1 // pred_check
      _
    $region11: #{mamba_conv_text_encoder.1} parent=1 // pred_check_branch
      %25 = sbr.rel (0) target = $region13
    $region12: #{mamba_conv_text_encoder.1} parent=1 // pred_region
      %27 = vsyncadd [#allocation3], 0
      %s28 = sshll.u32 %s2, 4
      %s29 = int_to_ptr.hbm [resolvable:$true] %s28
      %s30 = sshll.u32 [#allocation2], 4
      %s31 = int_to_ptr.vmem [resolvable:$true] %s30
      %36 = dma.hbm_to_vmem [thread:$0]  %s29, 2048, %s31, [#allocation3], 64, 64, 4
    $region13: #{mamba_conv_text_encoder.1} parent=1 // pred_fallthru
      _
    // Predicated region
    $region14: #{mamba_conv_text_encoder.1} parent=1 // pred_check
      _
    $region15: #{mamba_conv_text_encoder.1} parent=1 // pred_check_branch
      %38 = sbr.rel (0) target = $region17
    $region16: #{mamba_conv_text_encoder.1} parent=1 // pred_region
      %40 = vsyncadd [#allocation5], 0
      %s41 = sshll.u32 %s3, 4
      %s42 = int_to_ptr.hbm [resolvable:$true] %s41
      %s43 = sshll.u32 [#allocation4], 4
      %s44 = int_to_ptr.vmem [resolvable:$true] %s43
      %49 = dma.hbm_to_vmem [thread:$0]  %s42, 1024, %s44, [#allocation5], 128, 128, 8
    $region17: #{mamba_conv_text_encoder.1} parent=1 // pred_fallthru
      _
    // Predicated region
    $region18: #{mamba_conv_text_encoder.1} parent=1 // pred_check
      _
    $region19: #{mamba_conv_text_encoder.1} parent=1 // pred_check_branch
      %51 = sbr.rel (0) target = $region21
    $region20: #{mamba_conv_text_encoder.1} parent=1 // pred_region
      _
    $region21: #{mamba_conv_text_encoder.1} parent=1 // pred_fallthru
      _
    // Predicated region
    $region22: #{mamba_conv_text_encoder.1} parent=1 // pred_check
      _
    $region23: #{mamba_conv_text_encoder.1} parent=1 // pred_check_branch
      %53 = sbr.rel (0) target = $region25
    $region24: #{mamba_conv_text_encoder.1} parent=1 // pred_region
      _
    $region25: #{mamba_conv_text_encoder.1} parent=1 // pred_fallthru
      _
    // Predicated region
    $region26: #{mamba_conv_text_encoder.1} parent=1 // pred_check
      _
    $region27: #{mamba_conv_text_encoder.1} parent=1 // pred_check_branch
      %55 = sbr.rel (0) target = $region29
    $region28: #{mamba_conv_text_encoder.1} parent=1 // pred_region
      %57 = vsyncadd [#allocation5], 0
      %s58 = sshll.u32 %s6, 4
      %s59 = int_to_ptr.hbm [resolvable:$true] %s58
      %s60 = sshll.u32 [#allocation6], 4
      %s61 = int_to_ptr.vmem [resolvable:$true] %s60
      %66 = dma.hbm_to_vmem [thread:$0]  %s59, 9216, %s61, [#allocation5], 64, 64, 4
    $region29: #{mamba_conv_text_encoder.1} parent=1 // pred_fallthru
      _
    // Predicated region
    $region30: #{mamba_conv_text_encoder.1} parent=1 // pred_check
      _
    $region31: #{mamba_conv_text_encoder.1} parent=1 // pred_check_branch
      %68 = sbr.rel (0) target = $region33
    $region32: #{mamba_conv_text_encoder.1} parent=1 // pred_region
      _
    $region33: #{mamba_conv_text_encoder.1} parent=1 // pred_fallthru
      _
    // Predicated region
    $region34: #{mamba_conv_text_encoder.1} parent=1 // pred_check
      _
    $region35: #{mamba_conv_text_encoder.1} parent=1 // pred_check_branch
      %70 = sbr.rel (0) target = $region37
    $region36: #{mamba_conv_text_encoder.1} parent=1 // pred_region
      %72 = vsyncadd [#allocation8], 0
      %s73 = sshll.u32 %s8, 4
      %s74 = int_to_ptr.hbm [resolvable:$true] %s73
      %s75 = sshll.u32 [#allocation7], 4
      %s76 = int_to_ptr.vmem [resolvable:$true] %s75
      %81 = dma.hbm_to_vmem [thread:$0]  %s74, 6144, %s76, [#allocation8], 128, 128, 8
    $region37: #{mamba_conv_text_encoder.1} parent=1 // pred_fallthru
      _
    // Predicated region
    $region38: #{mamba_conv_text_encoder.1} parent=1 // pred_check
      _
    $region39: #{mamba_conv_text_encoder.1} parent=1 // pred_check_branch
      %83 = sbr.rel (0) target = $region41
    $region40: #{mamba_conv_text_encoder.1} parent=1 // pred_region
      _
    $region41: #{mamba_conv_text_encoder.1} parent=1 // pred_fallthru
      _
    // Predicated region
    $region42: #{mamba_conv_text_encoder.1} parent=1 // pred_check
      _
    $region43: #{mamba_conv_text_encoder.1} parent=1 // pred_check_branch
      %85 = sbr.rel (0) target = $region45
    $region44: #{mamba_conv_text_encoder.1} parent=1 // pred_region
      %87 = vsyncadd [#allocation8], 0
      %s88 = sshll.u32 %s10, 4
      %s89 = int_to_ptr.hbm [resolvable:$true] %s88
      %s90 = sshll.u32 [#allocation9], 4
      %s91 = int_to_ptr.vmem [resolvable:$true] %s90
      %96 = dma.hbm_to_vmem [thread:$0]  %s89, 2048, %s91, [#allocation8], 64, 64, 4
    $region45: #{mamba_conv_text_encoder.1} parent=1 // pred_fallthru
      _
    // Predicated region
    $region46: #{mamba_conv_text_encoder.1} parent=1 // pred_check
      _
    $region47: #{mamba_conv_text_encoder.1} parent=1 // pred_check_branch
      %98 = sbr.rel (0) target = $region49
    $region48: #{mamba_conv_text_encoder.1} parent=1 // pred_region
      _
    $region49: #{mamba_conv_text_encoder.1} parent=1 // pred_fallthru
      _
    // Predicated region
    $region50: #{mamba_conv_text_encoder.1} parent=1 // pred_check
      _
    $region51: #{mamba_conv_text_encoder.1} parent=1 // pred_check_branch
      %100 = sbr.rel (0) target = $region53
    $region52: #{mamba_conv_text_encoder.1} parent=1 // pred_region
      %102 = dma.done [#allocation3], 2048
    $region53: #{mamba_conv_text_encoder.1} parent=1 // pred_fallthru
      _
    // Predicated region
    $region54: #{mamba_conv_text_encoder.1} parent=1 // pred_check
      _
    $region55: #{mamba_conv_text_encoder.1} parent=1 // pred_check_branch
      %104 = sbr.rel (0) target = $region57
    $region56: #{mamba_conv_text_encoder.1} parent=1 // pred_region
      %106 = dma.done [#allocation5], 1024
    $region57: #{mamba_conv_text_encoder.1} parent=1 // pred_fallthru
      _
    // Predicated region
    $region58: #{mamba_conv_text_encoder.1} parent=1 // pred_check
      _
    $region59: #{mamba_conv_text_encoder.1} parent=1 // pred_check_branch
      %108 = sbr.rel (0) target = $region61
    $region60: #{mamba_conv_text_encoder.1} parent=1 // pred_region
      %110 = dma.done [#allocation5], 9216
    $region61: #{mamba_conv_text_encoder.1} parent=1 // pred_fallthru
      _
    // Predicated region
    $region62: #{mamba_conv_text_encoder.1} parent=1 // pred_check
      _
    $region63: #{mamba_conv_text_encoder.1} parent=1 // pred_check_branch
      %112 = sbr.rel (0) target = $region65
    $region64: #{mamba_conv_text_encoder.1} parent=1 // pred_region
      %114 = dma.done [#allocation8], 6144
    $region65: #{mamba_conv_text_encoder.1} parent=1 // pred_fallthru
      _
    // Predicated region
    $region66: #{mamba_conv_text_encoder.1} parent=1 // pred_check
      _
    $region67: #{mamba_conv_text_encoder.1} parent=1 // pred_check_branch
      %116 = sbr.rel (0) target = $region69
    $region68: #{mamba_conv_text_encoder.1} parent=1 // pred_region
      %118 = dma.done [#allocation8], 2048
    $region69: #{mamba_conv_text_encoder.1} parent=1 // pred_fallthru
      _
    %v120 = vlaneseq
    %v121 = vand.u32 %v120, 127
    %v122 = vadd.s32 %v121, 128
    %v123 = vld [vmem:[%s0] sm:$0xff]
    %v124 = vld [vmem:[%s0 + $0x8] sm:$0xff]
    %vm125 = vcmp.lt.s32.totalorder %v121, 128
    %vm126 = vcmp.lt.s32.totalorder %v122, 128
    %127 = vset.pattern.permute.xlu0 0
    %128 = vperm.xlu0 %127, %v123
    %v129 = vpop.permute.xlu0 %128
    %130 = vset.pattern.permute.xlu0 0
    %131 = vperm.xlu0 %130, %v124
    %v132 = vpop.permute.xlu0 %131
    %133 = vset.pattern.permute.xlu0 1
    %134 = vperm.xlu0 %133, %v123
    %v135 = vpop.permute.xlu0 %134
    %136 = vset.pattern.permute.xlu0 1
    %137 = vperm.xlu0 %136, %v124
    %v138 = vpop.permute.xlu0 %137
    %v139 = vsel %vm125, %v129, %v135
    %v140 = vsel %vm126, %v129, %v135
    %v141 = vsel %vm125, %v132, %v138
    %v142 = vsel %vm126, %v132, %v138
    %vm143 = vcmp.lt.s32.totalorder %v121, 0
    %v144 = vsub.s32 0, %v121
    %v145 = vsel %vm143, %v144, %v121
    %v146 = vshrl.u32 %v145, 7
    %v147 = vand.u32 %v145, 127
    %v148 = vsub.s32 0, %v147
    %v149 = vsel %vm143, %v148, %v147
    %vm150 = vcmp.lt.s32.totalorder %v122, 0
    %v151 = vsub.s32 0, %v122
    %v152 = vsel %vm150, %v151, %v122
    %v153 = vshrl.u32 %v152, 7
    %v154 = vand.u32 %v152, 127
    %v155 = vsub.s32 0, %v154
    %v156 = vsel %vm150, %v155, %v154
    %vm157 = vcmp.ne.s32.totalorder %v149, 0
    %vm158 = vcmp.ne.s32.totalorder %v156, 0
    %vm159 = vcmp.lt.s32.totalorder %v149, 0
    %vm160 = vcmp.lt.s32.totalorder %v156, 0
    %vm161 = vmand %vm159, %vm157
    %vm162 = vmand %vm160, %vm158
    %v163 = vadd.s32 %v149, 128
    %v164 = vadd.s32 %v156, 128
    %v165 = vsel %vm161, %v163, %v149
    %v166 = vsel %vm162, %v164, %v156
    %vm167 = vcmp.eq.s32.totalorder %v165, %v139
    %vm168 = vcmp.eq.s32.totalorder %v166, %v140
    %vm169 = vcmp.eq.s32.totalorder %v165, %v141
    %vm170 = vcmp.eq.s32.totalorder %v166, %v142
    %v171 = vsel %vm167, 1, 0
    %v172 = vsel %vm168, 1, 0
    %v173 = vsel %vm169, 1, 0
    %v174 = vsel %vm170, 1, 0
    %v175 = vcvt.s32.f32 %v171
    %v176 = vcvt.s32.f32 %v172
    %v177 = vcvt.s32.f32 %v173
    %v178 = vcvt.s32.f32 %v174
    %v179 = vpack.c.bf16 %v177, %v175
    %v180 = vpack.c.bf16 %v178, %v176
    %v181 = vld [vmem:[#allocation2] sm:$0xf]
    %v182 = vld [vmem:[#allocation2 + $0x4] sm:$0xf]
    %v183 = vld [vmem:[#allocation2 + $0x8] sm:$0xf]
    %v184 = vld [vmem:[#allocation2 + $0xc] sm:$0xf]
    %v185 = vld [vmem:[#allocation2 + $0x10] sm:$0xf]
    %v186 = vld [vmem:[#allocation2 + $0x14] sm:$0xf]
    %v187 = vld [vmem:[#allocation2 + $0x18] sm:$0xf]
    %v188 = vld [vmem:[#allocation2 + $0x1c] sm:$0xf]
    %v189 = vld [vmem:[#allocation2 + $0x20] sm:$0xf]
    %v190 = vld [vmem:[#allocation2 + $0x24] sm:$0xf]
    %v191 = vld [vmem:[#allocation2 + $0x28] sm:$0xf]
    %v192 = vld [vmem:[#allocation2 + $0x2c] sm:$0xf]
    %v193 = vld [vmem:[#allocation2 + $0x30] sm:$0xf]
    %v194 = vld [vmem:[#allocation2 + $0x34] sm:$0xf]
    %v195 = vld [vmem:[#allocation2 + $0x38] sm:$0xf]
    %v196 = vld [vmem:[#allocation2 + $0x3c] sm:$0xf]
    %v197 = vld [vmem:[#allocation2 + $0x40] sm:$0xf]
    %v198 = vld [vmem:[#allocation2 + $0x44] sm:$0xf]
    %v199 = vld [vmem:[#allocation2 + $0x48] sm:$0xf]
    %v200 = vld [vmem:[#allocation2 + $0x4c] sm:$0xf]
    %v201 = vld [vmem:[#allocation2 + $0x50] sm:$0xf]
    %v202 = vld [vmem:[#allocation2 + $0x54] sm:$0xf]
    %v203 = vld [vmem:[#allocation2 + $0x58] sm:$0xf]
    %v204 = vld [vmem:[#allocation2 + $0x5c] sm:$0xf]
    %v205 = vld [vmem:[#allocation2 + $0x60] sm:$0xf]
    %v206 = vld [vmem:[#allocation2 + $0x64] sm:$0xf]
    %v207 = vld [vmem:[#allocation2 + $0x68] sm:$0xf]
    %v208 = vld [vmem:[#allocation2 + $0x6c] sm:$0xf]
    %v209 = vld [vmem:[#allocation2 + $0x70] sm:$0xf]
    %v210 = vld [vmem:[#allocation2 + $0x74] sm:$0xf]
    %v211 = vld [vmem:[#allocation2 + $0x78] sm:$0xf]
    %v212 = vld [vmem:[#allocation2 + $0x7c] sm:$0xf]
    %v245 = vunpack.c.l.b16 %v181
    %v246 = vunpack.c.l.b16 %v182
    %v247 = vunpack.c.l.b16 %v183
    %v248 = vunpack.c.l.b16 %v184
    %v249 = vunpack.c.l.b16 %v185
    %v250 = vunpack.c.l.b16 %v186
    %v251 = vunpack.c.l.b16 %v187
    %v252 = vunpack.c.l.b16 %v188
    %v253 = vunpack.c.l.b16 %v189
    %v254 = vunpack.c.l.b16 %v190
    %v255 = vunpack.c.l.b16 %v191
    %v256 = vunpack.c.l.b16 %v192
    %v257 = vunpack.c.l.b16 %v193
    %v258 = vunpack.c.l.b16 %v194
    %v259 = vunpack.c.l.b16 %v195
    %v260 = vunpack.c.l.b16 %v196
    %v261 = vunpack.c.l.b16 %v197
    %v262 = vunpack.c.l.b16 %v198
    %v263 = vunpack.c.l.b16 %v199
    %v264 = vunpack.c.l.b16 %v200
    %v265 = vunpack.c.l.b16 %v201
    %v266 = vunpack.c.l.b16 %v202
    %v267 = vunpack.c.l.b16 %v203
    %v268 = vunpack.c.l.b16 %v204
    %v269 = vunpack.c.l.b16 %v205
    %v270 = vunpack.c.l.b16 %v206
    %v271 = vunpack.c.l.b16 %v207
    %v272 = vunpack.c.l.b16 %v208
    %v273 = vunpack.c.l.b16 %v209
    %v274 = vunpack.c.l.b16 %v210
    %v275 = vunpack.c.l.b16 %v211
    %v276 = vunpack.c.l.b16 %v212
    %v277 = vpack.c.b16 %v246, %v245
    %v278 = vpack.c.b16 %v248, %v247
    %v279 = vpack.c.b16 %v250, %v249
    %v280 = vpack.c.b16 %v252, %v251
    %v281 = vpack.c.b16 %v254, %v253
    %v282 = vpack.c.b16 %v256, %v255
    %v283 = vpack.c.b16 %v258, %v257
    %v284 = vpack.c.b16 %v260, %v259
    %v285 = vpack.c.b16 %v262, %v261
    %v286 = vpack.c.b16 %v264, %v263
    %v287 = vpack.c.b16 %v266, %v265
    %v288 = vpack.c.b16 %v268, %v267
    %v289 = vpack.c.b16 %v270, %v269
    %v290 = vpack.c.b16 %v272, %v271
    %v291 = vpack.c.b16 %v274, %v273
    %v292 = vpack.c.b16 %v276, %v275
    %309 = vmatpush.bf16.msra.mxu0 %v284
    %310 = vmatpush.bf16.msra.mxu0 %v283
    %311 = vmatpush.bf16.msra.mxu0 %v282
    %312 = vmatpush.bf16.msra.mxu0 %v281
    %313 = vmatpush.bf16.msra.mxu0 %v280
    %314 = vmatpush.bf16.msra.mxu0 %v279
    %315 = vmatpush.bf16.msra.mxu0 %v278
    %316 = vmatpush.bf16.msra.mxu0 %v277
    %317 = vmatmul.bf16.gmra.mxu0 %v179
    %v318 = vpop.f32.mrf.mxu0
    %v319 = vadd.f32 0.0, %v318
    %v320 = vpop.f32.mrf.mxu0
    %v321 = vadd.f32 0.0, %v320
    %322 = vdwg.mxu0
    %323 = vmatpush.bf16.msra.mxu0 %v292
    %324 = vmatpush.bf16.msra.mxu0 %v291
    %325 = vmatpush.bf16.msra.mxu0 %v290
    %326 = vmatpush.bf16.msra.mxu0 %v289
    %327 = vmatpush.bf16.msra.mxu0 %v288
    %328 = vmatpush.bf16.msra.mxu0 %v287
    %329 = vmatpush.bf16.msra.mxu0 %v286
    %330 = vmatpush.bf16.msra.mxu0 %v285
    %331 = vmatmul.bf16.gmra.mxu0 %v180
    %v332 = vpop.f32.mrf.mxu0
    %v333 = vadd.f32 %v319, %v332
    %v334 = vpop.f32.mrf.mxu0
    %v335 = vadd.f32 %v321, %v334
    %336 = vdwg.mxu0
    %v337 = vld [vmem:[%s1] sm:$0x1]
    %v338 = vld [vmem:[#allocation4] sm:$0xff]
    %v339 = vld [vmem:[#allocation4 + $0x8] sm:$0xff]
    %v340 = vld [vmem:[#allocation4 + $0x10] sm:$0xff]
    %v341 = vld [vmem:[#allocation4 + $0x18] sm:$0xff]
    %v342 = vld [vmem:[#allocation4 + $0x20] sm:$0xff]
    %v343 = vld [vmem:[#allocation4 + $0x28] sm:$0xff]
    %v344 = vld [vmem:[#allocation4 + $0x30] sm:$0xff]
    %v345 = vld [vmem:[#allocation4 + $0x38] sm:$0xff]
    %v346 = vld [vmem:[%s4] sm:$0x3]
    %v355 = vunpack.c.l.b16 %v338
    %v356 = vunpack.c.h.b16 %v338
    %v357 = vunpack.c.l.b16 %v339
    %v358 = vunpack.c.h.b16 %v339
    %v359 = vunpack.c.l.b16 %v340
    %v360 = vunpack.c.h.b16 %v340
    %v361 = vunpack.c.l.b16 %v341
    %v362 = vunpack.c.h.b16 %v341
    %v363 = vunpack.c.l.b16 %v342
    %v364 = vunpack.c.h.b16 %v342
    %v365 = vunpack.c.l.b16 %v343
    %v366 = vunpack.c.h.b16 %v343
    %v367 = vunpack.c.l.b16 %v344
    %v368 = vunpack.c.h.b16 %v344
    %v369 = vunpack.c.l.b16 %v345
    %v370 = vunpack.c.h.b16 %v345
    %v371 = vpack.c.b16 %v357, %v355
    %v372 = vpack.c.b16 %v358, %v356
    %v373 = vpack.c.b16 %v361, %v359
    %v374 = vpack.c.b16 %v362, %v360
    %v375 = vpack.c.b16 %v365, %v363
    %v376 = vpack.c.b16 %v366, %v364
    %v377 = vpack.c.b16 %v369, %v367
    %v378 = vpack.c.b16 %v370, %v368
    %v388 = vperm.slane %v346, 0
    %v389 = vperm.slane %v346, 1
    %vm392 = vcmask 523264
    %v394 = vsel %vm392, %v337, 0
    %396 = vmatpush.bf16.msra.mxu0 0
    %397 = vmatpush.bf16.msra.mxu0 0
    %398 = vmatpush.bf16.msra.mxu0 0
    %399 = vmatpush.bf16.msra.mxu0 0
    %400 = vmatpush.bf16.msra.mxu0 %v377
    %401 = vmatpush.bf16.msra.mxu0 %v375
    %402 = vmatpush.bf16.msra.mxu0 %v373
    %403 = vmatpush.bf16.msra.mxu0 %v371
    %404 = vmatmul.bf16.gmra.mxu0 %v394
    %v405 = vpop.f32.mrf.mxu0
    %v406 = vadd.f32 %v388, %v405
    %v407 = vpop.f32.mrf.mxu0
    %408 = vdwg.mxu0
    %409 = vmatpush.bf16.msra.mxu0 0
    %410 = vmatpush.bf16.msra.mxu0 0
    %411 = vmatpush.bf16.msra.mxu0 0
    %412 = vmatpush.bf16.msra.mxu0 0
    %413 = vmatpush.bf16.msra.mxu0 %v378
    %414 = vmatpush.bf16.msra.mxu0 %v376
    %415 = vmatpush.bf16.msra.mxu0 %v374
    %416 = vmatpush.bf16.msra.mxu0 %v372
    %417 = vmatmul.bf16.gmra.mxu0 %v394
    %v418 = vpop.f32.mrf.mxu0
    %v419 = vadd.f32 %v389, %v418
    %v420 = vpop.f32.mrf.mxu0
    %421 = vdwg.mxu0
    %v422 = vperm.slane %v406, 0
    %v423 = vmul.f32 %v422, %v333
    %v424 = vmul.f32 %v422, %v335
    %v425 = vperm.slane %v419, 0
    %v426 = vadd.f32 %v423, %v425
    %v427 = vadd.f32 %v424, %v425
    %v428 = vld [vmem:[%s5] sm:$0xff]
    %v429 = vld [vmem:[%s5 + $0x8] sm:$0xff]
    %vm430 = vcmask 130048
    %v432 = vsel %vm430, %v428, 0
    %v435 = vsel %vm430, %v429, 0
    %437 = vmatpush.msra.mxu0 0.0
    %438 = vmatpush.msra.mxu0 0.0
    %439 = vmatpush.msra.mxu0 0.0
    %440 = vmatpush.msra.mxu0 0.0
    %441 = vmatpush.msra.mxu0 0.0
    %442 = vmatpush.msra.mxu0 0.0
    %443 = vmatpush.msra.mxu0 0.0
    %444 = vmatpush.msra.mxu0 0.0
    %445 = vmatpush.msra.mxu0 0.0
    %446 = vmatpush.msra.mxu0 0.0
    %447 = vmatpush.msra.mxu0 0.0
    %448 = vmatpush.msra.mxu0 0.0
    %449 = vmatpush.msra.mxu0 0.0
    %450 = vmatpush.msra.mxu0 0.0
    %451 = vmatpush.msra.mxu0 %v427
    %452 = vmatpush.msra.mxu0 %v426
    %453 = vmatmul.f32.gmra.mxu0 %v432
    %v454 = vpop.f32.mrf.mxu0
    %v455 = vadd.f32 0.0, %v454
    %456 = vmatmul.f32.gmra.mxu0 %v435
    %v457 = vpop.f32.mrf.mxu0
    %v458 = vadd.f32 0.0, %v457
    %459 = vdwg.mxu0
    %v460 = vlaneseq
    %v461 = vshrl.u32 %v460, 7
    %v462 = vadd.s32 %v461, 8
    %v463 = vadd.s32 %v461, 4294967288
    %v464 = vadd.s32 %v462, 4294967288
    %vm465 = vcmp.ge.s32.totalorder %v463, 0
    %vm466 = vcmp.ge.s32.totalorder %v464, 0
    %vm467 = vcmp.lt.s32.totalorder %v463, 16
    %vm468 = vcmp.lt.s32.totalorder %v464, 16
    %vm469 = vmand %vm465, %vm467
    %vm470 = vmand %vm466, %vm468
    %v471 = vsel %vm469, 1, 0
    %v472 = vsel %vm470, 1, 0
    %vm473 = vcmp.eq.s32.totalorder %v471, 1
    %vm474 = vcmp.eq.s32.totalorder %v472, 1
    %v475 = vsel %vm473, %v427, 0.0
    %v476 = vsel %vm474, %v426, 0.0
    %v477 = vrot.slane %v426, 4
    %v478 = vrot.slane %v427, 4
    %vm479 = vcmp.lt.s32.totalorder %v461, 4
    %v480 = vsel %vm479, %v477, %v478
    %v481 = vsel %vm479, %v478, %v477
    %v482 = vadd.s32 %v461, 4294967292
    %v483 = vadd.s32 %v462, 4294967292
    %vm484 = vcmp.ge.s32.totalorder %v482, 0
    %vm485 = vcmp.ge.s32.totalorder %v483, 0
    %vm486 = vcmp.lt.s32.totalorder %v482, 16
    %vm487 = vcmp.lt.s32.totalorder %v483, 16
    %vm488 = vmand %vm484, %vm486
    %vm489 = vmand %vm485, %vm487
    %v490 = vsel %vm488, 1, 0
    %v491 = vsel %vm489, 1, 0
    %vm492 = vcmp.eq.s32.totalorder %v490, 1
    %vm493 = vcmp.eq.s32.totalorder %v491, 1
    %v494 = vsel %vm492, %v481, 0.0
    %v495 = vsel %vm493, %v480, 0.0
    %v496 = vrot.slane %v426, 6
    %v497 = vrot.slane %v427, 6
    %vm498 = vcmp.lt.s32.totalorder %v461, 2
    %v499 = vsel %vm498, %v496, %v497
    %v500 = vsel %vm498, %v497, %v496
    %v501 = vadd.s32 %v461, 4294967294
    %v502 = vadd.s32 %v462, 4294967294
    %vm503 = vcmp.ge.s32.totalorder %v501, 0
    %vm504 = vcmp.ge.s32.totalorder %v502, 0
    %vm505 = vcmp.lt.s32.totalorder %v501, 16
    %vm506 = vcmp.lt.s32.totalorder %v502, 16
    %vm507 = vmand %vm503, %vm505
    %vm508 = vmand %vm504, %vm506
    %v509 = vsel %vm507, 1, 0
    %v510 = vsel %vm508, 1, 0
    %vm511 = vcmp.eq.s32.totalorder %v509, 1
    %vm512 = vcmp.eq.s32.totalorder %v510, 1
    %v513 = vsel %vm511, %v500, 0.0
    %v514 = vsel %vm512, %v499, 0.0
    %v515 = vrot.slane %v426, 7
    %v516 = vrot.slane %v427, 7
    %vm517 = vcmp.lt.s32.totalorder %v461, 1
    %v518 = vsel %vm517, %v515, %v516
    %v519 = vsel %vm517, %v516, %v515
    %v520 = vadd.s32 %v461, 4294967295
    %v521 = vadd.s32 %v462, 4294967295
    %vm522 = vcmp.ge.s32.totalorder %v520, 0
    %vm523 = vcmp.ge.s32.totalorder %v521, 0
    %vm524 = vcmp.lt.s32.totalorder %v520, 16
    %vm525 = vcmp.lt.s32.totalorder %v521, 16
    %vm526 = vmand %vm522, %vm524
    %vm527 = vmand %vm523, %vm525
    %v528 = vsel %vm526, 1, 0
    %v529 = vsel %vm527, 1, 0
    %vm530 = vcmp.eq.s32.totalorder %v528, 1
    %vm531 = vcmp.eq.s32.totalorder %v529, 1
    %v532 = vsel %vm530, %v519, 0.0
    %v533 = vsel %vm531, %v518, 0.0
    %vm534 = vcmp.ge.s32.totalorder %v461, 0
    %vm535 = vcmp.ge.s32.totalorder %v462, 0
    %vm536 = vcmp.lt.s32.totalorder %v461, 16
    %vm537 = vcmp.lt.s32.totalorder %v462, 16
    %vm538 = vmand %vm534, %vm536
    %vm539 = vmand %vm535, %vm537
    %v540 = vsel %vm538, 1, 0
    %v541 = vsel %vm539, 1, 0
    %vm542 = vcmp.eq.s32.totalorder %v540, 1
    %vm543 = vcmp.eq.s32.totalorder %v541, 1
    %v544 = vsel %vm542, %v426, 0.0
    %v545 = vsel %vm543, %v427, 0.0
    %v546 = vrot.slane %v426, 1
    %v547 = vrot.slane %v427, 1
    %vm548 = vcmp.lt.s32.totalorder %v461, 7
    %v549 = vsel %vm548, %v546, %v547
    %v550 = vsel %vm548, %v547, %v546
    %v551 = vadd.s32 %v461, 1
    %v552 = vadd.s32 %v462, 1
    %vm553 = vcmp.ge.s32.totalorder %v551, 0
    %vm554 = vcmp.ge.s32.totalorder %v552, 0
    %vm555 = vcmp.lt.s32.totalorder %v551, 16
    %vm556 = vcmp.lt.s32.totalorder %v552, 16
    %vm557 = vmand %vm553, %vm555
    %vm558 = vmand %vm554, %vm556
    %v559 = vsel %vm557, 1, 0
    %v560 = vsel %vm558, 1, 0
    %vm561 = vcmp.eq.s32.totalorder %v559, 1
    %vm562 = vcmp.eq.s32.totalorder %v560, 1
    %v563 = vsel %vm561, %v549, 0.0
    %v564 = vsel %vm562, %v550, 0.0
    %v565 = vrot.slane %v426, 2
    %v566 = vrot.slane %v427, 2
    %vm567 = vcmp.lt.s32.totalorder %v461, 6
    %v568 = vsel %vm567, %v565, %v566
    %v569 = vsel %vm567, %v566, %v565
    %v570 = vadd.s32 %v461, 2
    %v571 = vadd.s32 %v462, 2
    %vm572 = vcmp.ge.s32.totalorder %v570, 0
    %vm573 = vcmp.ge.s32.totalorder %v571, 0
    %vm574 = vcmp.lt.s32.totalorder %v570, 16
    %vm575 = vcmp.lt.s32.totalorder %v571, 16
    %vm576 = vmand %vm572, %vm574
    %vm577 = vmand %vm573, %vm575
    %v578 = vsel %vm576, 1, 0
    %v579 = vsel %vm577, 1, 0
    %vm580 = vcmp.eq.s32.totalorder %v578, 1
    %vm581 = vcmp.eq.s32.totalorder %v579, 1
    %v582 = vsel %vm580, %v568, 0.0
    %v583 = vsel %vm581, %v569, 0.0
    %v584 = vadd.s32 %v461, 4
    %v585 = vadd.s32 %v462, 4
    %vm586 = vcmp.ge.s32.totalorder %v584, 0
    %vm587 = vcmp.ge.s32.totalorder %v585, 0
    %vm588 = vcmp.lt.s32.totalorder %v584, 16
    %vm589 = vcmp.lt.s32.totalorder %v585, 16
    %vm590 = vmand %vm586, %vm588
    %vm591 = vmand %vm587, %vm589
    %v592 = vsel %vm590, 1, 0
    %v593 = vsel %vm591, 1, 0
    %vm594 = vcmp.eq.s32.totalorder %v592, 1
    %vm595 = vcmp.eq.s32.totalorder %v593, 1
    %v596 = vsel %vm594, %v480, 0.0
    %v597 = vsel %vm595, %v481, 0.0
    %v598 = vadd.s32 %v462, 8
    %vm599 = vcmp.ge.s32.totalorder %v598, 0
    %vm600 = vcmp.lt.s32.totalorder %v598, 16
    %vm601 = vmand %vm599, %vm600
    %v602 = vsel %vm601, 1, 0
    %vm603 = vcmp.eq.s32.totalorder %v602, 1
    %v604 = vsel %vm603, %v426, 0.0
    %v605 = vpack.c.bf16 %v476, %v475
    %v606 = vpack.c.bf16 %v495, %v494
    %v607 = vpack.c.bf16 %v514, %v513
    %v608 = vpack.c.bf16 %v533, %v532
    %v609 = vpack.c.bf16 %v545, %v544
    %v610 = vpack.c.bf16 %v564, %v563
    %v611 = vpack.c.bf16 %v583, %v582
    %v612 = vpack.c.bf16 %v597, %v596
    %v613 = vpack.c.bf16 %v604, %v545
    %v614 = vld [vmem:[#allocation6] sm:$0xf]
    %v615 = vld [vmem:[#allocation6 + $0x4] sm:$0xf]
    %v616 = vld [vmem:[#allocation6 + $0x8] sm:$0xf]
    %v617 = vld [vmem:[#allocation6 + $0xc] sm:$0xf]
    %v618 = vld [vmem:[#allocation6 + $0x10] sm:$0xf]
    %v619 = vld [vmem:[#allocation6 + $0x14] sm:$0xf]
    %v620 = vld [vmem:[#allocation6 + $0x18] sm:$0xf]
    %v621 = vld [vmem:[#allocation6 + $0x1c] sm:$0xf]
    %v622 = vld [vmem:[#allocation6 + $0x20] sm:$0xf]
    %v623 = vld [vmem:[#allocation6 + $0x24] sm:$0xf]
    %v624 = vld [vmem:[#allocation6 + $0x28] sm:$0xf]
    %v625 = vld [vmem:[#allocation6 + $0x2c] sm:$0xf]
    %v626 = vld [vmem:[#allocation6 + $0x30] sm:$0xf]
    %v627 = vld [vmem:[#allocation6 + $0x34] sm:$0xf]
    %v628 = vld [vmem:[#allocation6 + $0x38] sm:$0xf]
    %v629 = vld [vmem:[#allocation6 + $0x3c] sm:$0xf]
    %v630 = vld [vmem:[#allocation6 + $0x40] sm:$0xf]
    %v631 = vld [vmem:[#allocation6 + $0x44] sm:$0xf]
    %v632 = vld [vmem:[#allocation6 + $0x48] sm:$0xf]
    %v633 = vld [vmem:[#allocation6 + $0x4c] sm:$0xf]
    %v634 = vld [vmem:[#allocation6 + $0x50] sm:$0xf]
    %v635 = vld [vmem:[#allocation6 + $0x54] sm:$0xf]
    %v636 = vld [vmem:[#allocation6 + $0x58] sm:$0xf]
    %v637 = vld [vmem:[#allocation6 + $0x5c] sm:$0xf]
    %v638 = vld [vmem:[#allocation6 + $0x60] sm:$0xf]
    %v639 = vld [vmem:[#allocation6 + $0x64] sm:$0xf]
    %v640 = vld [vmem:[#allocation6 + $0x68] sm:$0xf]
    %v641 = vld [vmem:[#allocation6 + $0x6c] sm:$0xf]
    %v642 = vld [vmem:[#allocation6 + $0x70] sm:$0xf]
    %v643 = vld [vmem:[#allocation6 + $0x74] sm:$0xf]
    %v644 = vld [vmem:[#allocation6 + $0x78] sm:$0xf]
    %v645 = vld [vmem:[#allocation6 + $0x7c] sm:$0xf]
    %v646 = vld [vmem:[#allocation6 + $0x80] sm:$0xf]
    %v647 = vld [vmem:[#allocation6 + $0x84] sm:$0xf]
    %v648 = vld [vmem:[#allocation6 + $0x88] sm:$0xf]
    %v649 = vld [vmem:[#allocation6 + $0x8c] sm:$0xf]
    %v650 = vld [vmem:[#allocation6 + $0x90] sm:$0xf]
    %v651 = vld [vmem:[#allocation6 + $0x94] sm:$0xf]
    %v652 = vld [vmem:[#allocation6 + $0x98] sm:$0xf]
    %v653 = vld [vmem:[#allocation6 + $0x9c] sm:$0xf]
    %v654 = vld [vmem:[#allocation6 + $0xa0] sm:$0xf]
    %v655 = vld [vmem:[#allocation6 + $0xa4] sm:$0xf]
    %v656 = vld [vmem:[#allocation6 + $0xa8] sm:$0xf]
    %v657 = vld [vmem:[#allocation6 + $0xac] sm:$0xf]
    %v658 = vld [vmem:[#allocation6 + $0xb0] sm:$0xf]
    %v659 = vld [vmem:[#allocation6 + $0xb4] sm:$0xf]
    %v660 = vld [vmem:[#allocation6 + $0xb8] sm:$0xf]
    %v661 = vld [vmem:[#allocation6 + $0xbc] sm:$0xf]
    %v662 = vld [vmem:[#allocation6 + $0xc0] sm:$0xf]
    %v663 = vld [vmem:[#allocation6 + $0xc4] sm:$0xf]
    %v664 = vld [vmem:[#allocation6 + $0xc8] sm:$0xf]
    %v665 = vld [vmem:[#allocation6 + $0xcc] sm:$0xf]
    %v666 = vld [vmem:[#allocation6 + $0xd0] sm:$0xf]
    %v667 = vld [vmem:[#allocation6 + $0xd4] sm:$0xf]
    %v668 = vld [vmem:[#allocation6 + $0xd8] sm:$0xf]
    %v669 = vld [vmem:[#allocation6 + $0xdc] sm:$0xf]
    %v670 = vld [vmem:[#allocation6 + $0xe0] sm:$0xf]
    %v671 = vld [vmem:[#allocation6 + $0xe4] sm:$0xf]
    %v672 = vld [vmem:[#allocation6 + $0xe8] sm:$0xf]
    %v673 = vld [vmem:[#allocation6 + $0xec] sm:$0xf]
    %v674 = vld [vmem:[#allocation6 + $0xf0] sm:$0xf]
    %v675 = vld [vmem:[#allocation6 + $0xf4] sm:$0xf]
    %v676 = vld [vmem:[#allocation6 + $0xf8] sm:$0xf]
    %v677 = vld [vmem:[#allocation6 + $0xfc] sm:$0xf]
    %v678 = vld [vmem:[#allocation6 + $0x100] sm:$0xf]
    %v679 = vld [vmem:[#allocation6 + $0x104] sm:$0xf]
    %v680 = vld [vmem:[#allocation6 + $0x108] sm:$0xf]
    %v681 = vld [vmem:[#allocation6 + $0x10c] sm:$0xf]
    %v682 = vld [vmem:[#allocation6 + $0x110] sm:$0xf]
    %v683 = vld [vmem:[#allocation6 + $0x114] sm:$0xf]
    %v684 = vld [vmem:[#allocation6 + $0x118] sm:$0xf]
    %v685 = vld [vmem:[#allocation6 + $0x11c] sm:$0xf]
    %v686 = vld [vmem:[#allocation6 + $0x120] sm:$0xf]
    %v687 = vld [vmem:[#allocation6 + $0x124] sm:$0xf]
    %v688 = vld [vmem:[#allocation6 + $0x128] sm:$0xf]
    %v689 = vld [vmem:[#allocation6 + $0x12c] sm:$0xf]
    %v690 = vld [vmem:[#allocation6 + $0x130] sm:$0xf]
    %v691 = vld [vmem:[#allocation6 + $0x134] sm:$0xf]
    %v692 = vld [vmem:[#allocation6 + $0x138] sm:$0xf]
    %v693 = vld [vmem:[#allocation6 + $0x13c] sm:$0xf]
    %v694 = vld [vmem:[#allocation6 + $0x140] sm:$0xf]
    %v695 = vld [vmem:[#allocation6 + $0x144] sm:$0xf]
    %v696 = vld [vmem:[#allocation6 + $0x148] sm:$0xf]
    %v697 = vld [vmem:[#allocation6 + $0x14c] sm:$0xf]
    %v698 = vld [vmem:[#allocation6 + $0x150] sm:$0xf]
    %v699 = vld [vmem:[#allocation6 + $0x154] sm:$0xf]
    %v700 = vld [vmem:[#allocation6 + $0x158] sm:$0xf]
    %v701 = vld [vmem:[#allocation6 + $0x15c] sm:$0xf]
    %v702 = vld [vmem:[#allocation6 + $0x160] sm:$0xf]
    %v703 = vld [vmem:[#allocation6 + $0x164] sm:$0xf]
    %v704 = vld [vmem:[#allocation6 + $0x168] sm:$0xf]
    %v705 = vld [vmem:[#allocation6 + $0x16c] sm:$0xf]
    %v706 = vld [vmem:[#allocation6 + $0x170] sm:$0xf]
    %v707 = vld [vmem:[#allocation6 + $0x174] sm:$0xf]
    %v708 = vld [vmem:[#allocation6 + $0x178] sm:$0xf]
    %v709 = vld [vmem:[#allocation6 + $0x17c] sm:$0xf]
    %v710 = vld [vmem:[#allocation6 + $0x180] sm:$0xf]
    %v711 = vld [vmem:[#allocation6 + $0x184] sm:$0xf]
    %v712 = vld [vmem:[#allocation6 + $0x188] sm:$0xf]
    %v713 = vld [vmem:[#allocation6 + $0x18c] sm:$0xf]
    %v714 = vld [vmem:[#allocation6 + $0x190] sm:$0xf]
    %v715 = vld [vmem:[#allocation6 + $0x194] sm:$0xf]
    %v716 = vld [vmem:[#allocation6 + $0x198] sm:$0xf]
    %v717 = vld [vmem:[#allocation6 + $0x19c] sm:$0xf]
    %v718 = vld [vmem:[#allocation6 + $0x1a0] sm:$0xf]
    %v719 = vld [vmem:[#allocation6 + $0x1a4] sm:$0xf]
    %v720 = vld [vmem:[#allocation6 + $0x1a8] sm:$0xf]
    %v721 = vld [vmem:[#allocation6 + $0x1ac] sm:$0xf]
    %v722 = vld [vmem:[#allocation6 + $0x1b0] sm:$0xf]
    %v723 = vld [vmem:[#allocation6 + $0x1b4] sm:$0xf]
    %v724 = vld [vmem:[#allocation6 + $0x1b8] sm:$0xf]
    %v725 = vld [vmem:[#allocation6 + $0x1bc] sm:$0xf]
    %v726 = vld [vmem:[#allocation6 + $0x1c0] sm:$0xf]
    %v727 = vld [vmem:[#allocation6 + $0x1c4] sm:$0xf]
    %v728 = vld [vmem:[#allocation6 + $0x1c8] sm:$0xf]
    %v729 = vld [vmem:[#allocation6 + $0x1cc] sm:$0xf]
    %v730 = vld [vmem:[#allocation6 + $0x1d0] sm:$0xf]
    %v731 = vld [vmem:[#allocation6 + $0x1d4] sm:$0xf]
    %v732 = vld [vmem:[#allocation6 + $0x1d8] sm:$0xf]
    %v733 = vld [vmem:[#allocation6 + $0x1dc] sm:$0xf]
    %v734 = vld [vmem:[#allocation6 + $0x1e0] sm:$0xf]
    %v735 = vld [vmem:[#allocation6 + $0x1e4] sm:$0xf]
    %v736 = vld [vmem:[#allocation6 + $0x1e8] sm:$0xf]
    %v737 = vld [vmem:[#allocation6 + $0x1ec] sm:$0xf]
    %v738 = vld [vmem:[#allocation6 + $0x1f0] sm:$0xf]
    %v739 = vld [vmem:[#allocation6 + $0x1f4] sm:$0xf]
    %v740 = vld [vmem:[#allocation6 + $0x1f8] sm:$0xf]
    %v741 = vld [vmem:[#allocation6 + $0x1fc] sm:$0xf]
    %v742 = vld [vmem:[#allocation6 + $0x200] sm:$0xf]
    %v743 = vld [vmem:[#allocation6 + $0x204] sm:$0xf]
    %v744 = vld [vmem:[#allocation6 + $0x208] sm:$0xf]
    %v745 = vld [vmem:[#allocation6 + $0x20c] sm:$0xf]
    %v746 = vld [vmem:[#allocation6 + $0x210] sm:$0xf]
    %v747 = vld [vmem:[#allocation6 + $0x214] sm:$0xf]
    %v748 = vld [vmem:[#allocation6 + $0x218] sm:$0xf]
    %v749 = vld [vmem:[#allocation6 + $0x21c] sm:$0xf]
    %v750 = vld [vmem:[#allocation6 + $0x220] sm:$0xf]
    %v751 = vld [vmem:[#allocation6 + $0x224] sm:$0xf]
    %v752 = vld [vmem:[#allocation6 + $0x228] sm:$0xf]
    %v753 = vld [vmem:[#allocation6 + $0x22c] sm:$0xf]
    %v754 = vld [vmem:[#allocation6 + $0x230] sm:$0xf]
    %v755 = vld [vmem:[#allocation6 + $0x234] sm:$0xf]
    %v756 = vld [vmem:[#allocation6 + $0x238] sm:$0xf]
    %v757 = vld [vmem:[#allocation6 + $0x23c] sm:$0xf]
    %v758 = vld [vmem:[%s7] sm:$0x1]
    %v760 = vperm.slane %v758, 0
    %v906 = vunpack.c.l.b16 %v614
    %v907 = vunpack.c.l.b16 %v615
    %v908 = vunpack.c.l.b16 %v616
    %v909 = vunpack.c.l.b16 %v617
    %v910 = vunpack.c.l.b16 %v618
    %v911 = vunpack.c.l.b16 %v619
    %v912 = vunpack.c.l.b16 %v620
    %v913 = vunpack.c.l.b16 %v621
    %v914 = vunpack.c.l.b16 %v622
    %v915 = vunpack.c.l.b16 %v623
    %v916 = vunpack.c.l.b16 %v624
    %v917 = vunpack.c.l.b16 %v625
    %v918 = vunpack.c.l.b16 %v626
    %v919 = vunpack.c.l.b16 %v627
    %v920 = vunpack.c.l.b16 %v628
    %v921 = vunpack.c.l.b16 %v629
    %v922 = vunpack.c.l.b16 %v630
    %v923 = vunpack.c.l.b16 %v631
    %v924 = vunpack.c.l.b16 %v632
    %v925 = vunpack.c.l.b16 %v633
    %v926 = vunpack.c.l.b16 %v634
    %v927 = vunpack.c.l.b16 %v635
    %v928 = vunpack.c.l.b16 %v636
    %v929 = vunpack.c.l.b16 %v637
    %v930 = vunpack.c.l.b16 %v638
    %v931 = vunpack.c.l.b16 %v639
    %v932 = vunpack.c.l.b16 %v640
    %v933 = vunpack.c.l.b16 %v641
    %v934 = vunpack.c.l.b16 %v642
    %v935 = vunpack.c.l.b16 %v643
    %v936 = vunpack.c.l.b16 %v644
    %v937 = vunpack.c.l.b16 %v645
    %v938 = vunpack.c.l.b16 %v646
    %v939 = vunpack.c.l.b16 %v647
    %v940 = vunpack.c.l.b16 %v648
    %v941 = vunpack.c.l.b16 %v649
    %v942 = vunpack.c.l.b16 %v650
    %v943 = vunpack.c.l.b16 %v651
    %v944 = vunpack.c.l.b16 %v652
    %v945 = vunpack.c.l.b16 %v653
    %v946 = vunpack.c.l.b16 %v654
    %v947 = vunpack.c.l.b16 %v655
    %v948 = vunpack.c.l.b16 %v656
    %v949 = vunpack.c.l.b16 %v657
    %v950 = vunpack.c.l.b16 %v658
    %v951 = vunpack.c.l.b16 %v659
    %v952 = vunpack.c.l.b16 %v660
    %v953 = vunpack.c.l.b16 %v661
    %v954 = vunpack.c.l.b16 %v662
    %v955 = vunpack.c.l.b16 %v663
    %v956 = vunpack.c.l.b16 %v664
    %v957 = vunpack.c.l.b16 %v665
    %v958 = vunpack.c.l.b16 %v666
    %v959 = vunpack.c.l.b16 %v667
    %v960 = vunpack.c.l.b16 %v668
    %v961 = vunpack.c.l.b16 %v669
    %v962 = vunpack.c.l.b16 %v670
    %v963 = vunpack.c.l.b16 %v671
    %v964 = vunpack.c.l.b16 %v672
    %v965 = vunpack.c.l.b16 %v673
    %v966 = vunpack.c.l.b16 %v674
    %v967 = vunpack.c.l.b16 %v675
    %v968 = vunpack.c.l.b16 %v676
    %v969 = vunpack.c.l.b16 %v677
    %v970 = vunpack.c.l.b16 %v678
    %v971 = vunpack.c.l.b16 %v679
    %v972 = vunpack.c.l.b16 %v680
    %v973 = vunpack.c.l.b16 %v681
    %v974 = vunpack.c.l.b16 %v682
    %v975 = vunpack.c.l.b16 %v683
    %v976 = vunpack.c.l.b16 %v684
    %v977 = vunpack.c.l.b16 %v685
    %v978 = vunpack.c.l.b16 %v686
    %v979 = vunpack.c.l.b16 %v687
    %v980 = vunpack.c.l.b16 %v688
    %v981 = vunpack.c.l.b16 %v689
    %v982 = vunpack.c.l.b16 %v690
    %v983 = vunpack.c.l.b16 %v691
    %v984 = vunpack.c.l.b16 %v692
    %v985 = vunpack.c.l.b16 %v693
    %v986 = vunpack.c.l.b16 %v694
    %v987 = vunpack.c.l.b16 %v695
    %v988 = vunpack.c.l.b16 %v696
    %v989 = vunpack.c.l.b16 %v697
    %v990 = vunpack.c.l.b16 %v698
    %v991 = vunpack.c.l.b16 %v699
    %v992 = vunpack.c.l.b16 %v700
    %v993 = vunpack.c.l.b16 %v701
    %v994 = vunpack.c.l.b16 %v702
    %v995 = vunpack.c.l.b16 %v703
    %v996 = vunpack.c.l.b16 %v704
    %v997 = vunpack.c.l.b16 %v705
    %v998 = vunpack.c.l.b16 %v706
    %v999 = vunpack.c.l.b16 %v707
    %v1000 = vunpack.c.l.b16 %v708
    %v1001 = vunpack.c.l.b16 %v709
    %v1002 = vunpack.c.l.b16 %v710
    %v1003 = vunpack.c.l.b16 %v711
    %v1004 = vunpack.c.l.b16 %v712
    %v1005 = vunpack.c.l.b16 %v713
    %v1006 = vunpack.c.l.b16 %v714
    %v1007 = vunpack.c.l.b16 %v715
    %v1008 = vunpack.c.l.b16 %v716
    %v1009 = vunpack.c.l.b16 %v717
    %v1010 = vunpack.c.l.b16 %v718
    %v1011 = vunpack.c.l.b16 %v719
    %v1012 = vunpack.c.l.b16 %v720
    %v1013 = vunpack.c.l.b16 %v721
    %v1014 = vunpack.c.l.b16 %v722
    %v1015 = vunpack.c.l.b16 %v723
    %v1016 = vunpack.c.l.b16 %v724
    %v1017 = vunpack.c.l.b16 %v725
    %v1018 = vunpack.c.l.b16 %v726
    %v1019 = vunpack.c.l.b16 %v727
    %v1020 = vunpack.c.l.b16 %v728
    %v1021 = vunpack.c.l.b16 %v729
    %v1022 = vunpack.c.l.b16 %v730
    %v1023 = vunpack.c.l.b16 %v731
    %v1024 = vunpack.c.l.b16 %v732
    %v1025 = vunpack.c.l.b16 %v733
    %v1026 = vunpack.c.l.b16 %v734
    %v1027 = vunpack.c.l.b16 %v735
    %v1028 = vunpack.c.l.b16 %v736
    %v1029 = vunpack.c.l.b16 %v737
    %v1030 = vunpack.c.l.b16 %v738
    %v1031 = vunpack.c.l.b16 %v739
    %v1032 = vunpack.c.l.b16 %v740
    %v1033 = vunpack.c.l.b16 %v741
    %v1034 = vunpack.c.l.b16 %v742
    %v1035 = vunpack.c.l.b16 %v743
    %v1036 = vunpack.c.l.b16 %v744
    %v1037 = vunpack.c.l.b16 %v745
    %v1038 = vunpack.c.l.b16 %v746
    %v1039 = vunpack.c.l.b16 %v747
    %v1040 = vunpack.c.l.b16 %v748
    %v1041 = vunpack.c.l.b16 %v749
    %v1042 = vunpack.c.l.b16 %v750
    %v1043 = vunpack.c.l.b16 %v751
    %v1044 = vunpack.c.l.b16 %v752
    %v1045 = vunpack.c.l.b16 %v753
    %v1046 = vunpack.c.l.b16 %v754
    %v1047 = vunpack.c.l.b16 %v755
    %v1048 = vunpack.c.l.b16 %v756
    %v1049 = vunpack.c.l.b16 %v757
    %v1050 = vpack.c.b16 %v907, %v906
    %v1051 = vpack.c.b16 %v909, %v908
    %v1052 = vpack.c.b16 %v911, %v910
    %v1053 = vpack.c.b16 %v913, %v912
    %v1054 = vpack.c.b16 %v915, %v914
    %v1055 = vpack.c.b16 %v917, %v916
    %v1056 = vpack.c.b16 %v919, %v918
    %v1057 = vpack.c.b16 %v921, %v920
    %v1058 = vpack.c.b16 %v923, %v922
    %v1059 = vpack.c.b16 %v925, %v924
    %v1060 = vpack.c.b16 %v927, %v926
    %v1061 = vpack.c.b16 %v929, %v928
    %v1062 = vpack.c.b16 %v931, %v930
    %v1063 = vpack.c.b16 %v933, %v932
    %v1064 = vpack.c.b16 %v935, %v934
    %v1065 = vpack.c.b16 %v937, %v936
    %v1066 = vpack.c.b16 %v939, %v938
    %v1067 = vpack.c.b16 %v941, %v940
    %v1068 = vpack.c.b16 %v943, %v942
    %v1069 = vpack.c.b16 %v945, %v944
    %v1070 = vpack.c.b16 %v947, %v946
    %v1071 = vpack.c.b16 %v949, %v948
    %v1072 = vpack.c.b16 %v951, %v950
    %v1073 = vpack.c.b16 %v953, %v952
    %v1074 = vpack.c.b16 %v955, %v954
    %v1075 = vpack.c.b16 %v957, %v956
    %v1076 = vpack.c.b16 %v959, %v958
    %v1077 = vpack.c.b16 %v961, %v960
    %v1078 = vpack.c.b16 %v963, %v962
    %v1079 = vpack.c.b16 %v965, %v964
    %v1080 = vpack.c.b16 %v967, %v966
    %v1081 = vpack.c.b16 %v969, %v968
    %v1082 = vpack.c.b16 %v971, %v970
    %v1083 = vpack.c.b16 %v973, %v972
    %v1084 = vpack.c.b16 %v975, %v974
    %v1085 = vpack.c.b16 %v977, %v976
    %v1086 = vpack.c.b16 %v979, %v978
    %v1087 = vpack.c.b16 %v981, %v980
    %v1088 = vpack.c.b16 %v983, %v982
    %v1089 = vpack.c.b16 %v985, %v984
    %v1090 = vpack.c.b16 %v987, %v986
    %v1091 = vpack.c.b16 %v989, %v988
    %v1092 = vpack.c.b16 %v991, %v990
    %v1093 = vpack.c.b16 %v993, %v992
    %v1094 = vpack.c.b16 %v995, %v994
    %v1095 = vpack.c.b16 %v997, %v996
    %v1096 = vpack.c.b16 %v999, %v998
    %v1097 = vpack.c.b16 %v1001, %v1000
    %v1098 = vpack.c.b16 %v1003, %v1002
    %v1099 = vpack.c.b16 %v1005, %v1004
    %v1100 = vpack.c.b16 %v1007, %v1006
    %v1101 = vpack.c.b16 %v1009, %v1008
    %v1102 = vpack.c.b16 %v1011, %v1010
    %v1103 = vpack.c.b16 %v1013, %v1012
    %v1104 = vpack.c.b16 %v1015, %v1014
    %v1105 = vpack.c.b16 %v1017, %v1016
    %v1106 = vpack.c.b16 %v1019, %v1018
    %v1107 = vpack.c.b16 %v1021, %v1020
    %v1108 = vpack.c.b16 %v1023, %v1022
    %v1109 = vpack.c.b16 %v1025, %v1024
    %v1110 = vpack.c.b16 %v1027, %v1026
    %v1111 = vpack.c.b16 %v1029, %v1028
    %v1112 = vpack.c.b16 %v1031, %v1030
    %v1113 = vpack.c.b16 %v1033, %v1032
    %v1114 = vpack.c.b16 %v1035, %v1034
    %v1115 = vpack.c.b16 %v1037, %v1036
    %v1116 = vpack.c.b16 %v1039, %v1038
    %v1117 = vpack.c.b16 %v1041, %v1040
    %v1118 = vpack.c.b16 %v1043, %v1042
    %v1119 = vpack.c.b16 %v1045, %v1044
    %v1120 = vpack.c.b16 %v1047, %v1046
    %v1121 = vpack.c.b16 %v1049, %v1048
    %1194 = vmatpush.bf16.msra.mxu0 %v1057
    %1195 = vmatpush.bf16.msra.mxu0 %v1056
    %1196 = vmatpush.bf16.msra.mxu0 %v1055
    %1197 = vmatpush.bf16.msra.mxu0 %v1054
    %1198 = vmatpush.bf16.msra.mxu0 %v1053
    %1199 = vmatpush.bf16.msra.mxu0 %v1052
    %1200 = vmatpush.bf16.msra.mxu0 %v1051
    %1201 = vmatpush.bf16.msra.mxu0 %v1050
    %1202 = vmatmul.bf16.gmra.mxu0 %v605
    %v1203 = vpop.f32.mrf.mxu0
    %v1204 = vadd.f32 %v760, %v1203
    %v1205 = vpop.f32.mrf.mxu0
    %v1206 = vadd.f32 %v760, %v1205
    %1207 = vdwg.mxu0
    %1208 = vmatpush.bf16.msra.mxu0 %v1065
    %1209 = vmatpush.bf16.msra.mxu0 %v1064
    %1210 = vmatpush.bf16.msra.mxu0 %v1063
    %1211 = vmatpush.bf16.msra.mxu0 %v1062
    %1212 = vmatpush.bf16.msra.mxu0 %v1061
    %1213 = vmatpush.bf16.msra.mxu0 %v1060
    %1214 = vmatpush.bf16.msra.mxu0 %v1059
    %1215 = vmatpush.bf16.msra.mxu0 %v1058
    %1216 = vmatmul.bf16.gmra.mxu0 %v606
    %v1217 = vpop.f32.mrf.mxu0
    %v1218 = vadd.f32 %v1204, %v1217
    %v1219 = vpop.f32.mrf.mxu0
    %v1220 = vadd.f32 %v1206, %v1219
    %1221 = vdwg.mxu0
    %1222 = vmatpush.bf16.msra.mxu0 %v1073
    %1223 = vmatpush.bf16.msra.mxu0 %v1072
    %1224 = vmatpush.bf16.msra.mxu0 %v1071
    %1225 = vmatpush.bf16.msra.mxu0 %v1070
    %1226 = vmatpush.bf16.msra.mxu0 %v1069
    %1227 = vmatpush.bf16.msra.mxu0 %v1068
    %1228 = vmatpush.bf16.msra.mxu0 %v1067
    %1229 = vmatpush.bf16.msra.mxu0 %v1066
    %1230 = vmatmul.bf16.gmra.mxu0 %v607
    %v1231 = vpop.f32.mrf.mxu0
    %v1232 = vadd.f32 %v1218, %v1231
    %v1233 = vpop.f32.mrf.mxu0
    %v1234 = vadd.f32 %v1220, %v1233
    %1235 = vdwg.mxu0
    %1236 = vmatpush.bf16.msra.mxu0 %v1081
    %1237 = vmatpush.bf16.msra.mxu0 %v1080
    %1238 = vmatpush.bf16.msra.mxu0 %v1079
    %1239 = vmatpush.bf16.msra.mxu0 %v1078
    %1240 = vmatpush.bf16.msra.mxu0 %v1077
    %1241 = vmatpush.bf16.msra.mxu0 %v1076
    %1242 = vmatpush.bf16.msra.mxu0 %v1075
    %1243 = vmatpush.bf16.msra.mxu0 %v1074
    %1244 = vmatmul.bf16.gmra.mxu0 %v608
    %v1245 = vpop.f32.mrf.mxu0
    %v1246 = vadd.f32 %v1232, %v1245
    %v1247 = vpop.f32.mrf.mxu0
    %v1248 = vadd.f32 %v1234, %v1247
    %1249 = vdwg.mxu0
    %1250 = vmatpush.bf16.msra.mxu0 %v1089
    %1251 = vmatpush.bf16.msra.mxu0 %v1088
    %1252 = vmatpush.bf16.msra.mxu0 %v1087
    %1253 = vmatpush.bf16.msra.mxu0 %v1086
    %1254 = vmatpush.bf16.msra.mxu0 %v1085
    %1255 = vmatpush.bf16.msra.mxu0 %v1084
    %1256 = vmatpush.bf16.msra.mxu0 %v1083
    %1257 = vmatpush.bf16.msra.mxu0 %v1082
    %1258 = vmatmul.bf16.gmra.mxu0 %v609
    %v1259 = vpop.f32.mrf.mxu0
    %v1260 = vadd.f32 %v1246, %v1259
    %v1261 = vpop.f32.mrf.mxu0
    %v1262 = vadd.f32 %v1248, %v1261
    %1263 = vdwg.mxu0
    %1264 = vmatpush.bf16.msra.mxu0 %v1097
    %1265 = vmatpush.bf16.msra.mxu0 %v1096
    %1266 = vmatpush.bf16.msra.mxu0 %v1095
    %1267 = vmatpush.bf16.msra.mxu0 %v1094
    %1268 = vmatpush.bf16.msra.mxu0 %v1093
    %1269 = vmatpush.bf16.msra.mxu0 %v1092
    %1270 = vmatpush.bf16.msra.mxu0 %v1091
    %1271 = vmatpush.bf16.msra.mxu0 %v1090
    %1272 = vmatmul.bf16.gmra.mxu0 %v610
    %v1273 = vpop.f32.mrf.mxu0
    %v1274 = vadd.f32 %v1260, %v1273
    %v1275 = vpop.f32.mrf.mxu0
    %v1276 = vadd.f32 %v1262, %v1275
    %1277 = vdwg.mxu0
    %1278 = vmatpush.bf16.msra.mxu0 %v1105
    %1279 = vmatpush.bf16.msra.mxu0 %v1104
    %1280 = vmatpush.bf16.msra.mxu0 %v1103
    %1281 = vmatpush.bf16.msra.mxu0 %v1102
    %1282 = vmatpush.bf16.msra.mxu0 %v1101
    %1283 = vmatpush.bf16.msra.mxu0 %v1100
    %1284 = vmatpush.bf16.msra.mxu0 %v1099
    %1285 = vmatpush.bf16.msra.mxu0 %v1098
    %1286 = vmatmul.bf16.gmra.mxu0 %v611
    %v1287 = vpop.f32.mrf.mxu0
    %v1288 = vadd.f32 %v1274, %v1287
    %v1289 = vpop.f32.mrf.mxu0
    %v1290 = vadd.f32 %v1276, %v1289
    %1291 = vdwg.mxu0
    %1292 = vmatpush.bf16.msra.mxu0 %v1113
    %1293 = vmatpush.bf16.msra.mxu0 %v1112
    %1294 = vmatpush.bf16.msra.mxu0 %v1111
    %1295 = vmatpush.bf16.msra.mxu0 %v1110
    %1296 = vmatpush.bf16.msra.mxu0 %v1109
    %1297 = vmatpush.bf16.msra.mxu0 %v1108
    %1298 = vmatpush.bf16.msra.mxu0 %v1107
    %1299 = vmatpush.bf16.msra.mxu0 %v1106
    %1300 = vmatmul.bf16.gmra.mxu0 %v612
    %v1301 = vpop.f32.mrf.mxu0
    %v1302 = vadd.f32 %v1288, %v1301
    %v1303 = vpop.f32.mrf.mxu0
    %v1304 = vadd.f32 %v1290, %v1303
    %1305 = vdwg.mxu0
    %1306 = vmatpush.bf16.msra.mxu0 %v1121
    %1307 = vmatpush.bf16.msra.mxu0 %v1120
    %1308 = vmatpush.bf16.msra.mxu0 %v1119
    %1309 = vmatpush.bf16.msra.mxu0 %v1118
    %1310 = vmatpush.bf16.msra.mxu0 %v1117
    %1311 = vmatpush.bf16.msra.mxu0 %v1116
    %1312 = vmatpush.bf16.msra.mxu0 %v1115
    %1313 = vmatpush.bf16.msra.mxu0 %v1114
    %1314 = vmatmul.bf16.gmra.mxu0 %v613
    %v1315 = vpop.f32.mrf.mxu0
    %v1316 = vadd.f32 %v1302, %v1315
    %v1317 = vpop.f32.mrf.mxu0
    %v1318 = vadd.f32 %v1304, %v1317
    %1319 = vdwg.mxu0
    %v1320 = vadd.f32 %v1316, %v426
    %v1321 = vadd.f32 %v1318, %v427
    %vm1322 = vcmp.lt.s32.totalorder %v121, 64
    %v1323 = vsel %vm1322, 1.0, -1.0
    %1324 = vadd.xlane.f32.xlu0 %v1320
    %v1325 = vpop.xlane.xlu0 %1324
    %1326 = vadd.xlane.f32.xlu0 %v1321
    %v1327 = vpop.xlane.xlu0 %1326
    %v1328 = vmul.f32 %v1320, %v1323
    %v1329 = vmul.f32 %v1321, %v1323
    %1330 = vadd.xlane.f32.xlu0 %v1328
    %v1331 = vpop.xlane.xlu0 %1330
    %1332 = vadd.xlane.f32.xlu0 %v1329
    %v1333 = vpop.xlane.xlu0 %1332
    %v1334 = vadd.f32 %v1325, %v1331
    %v1335 = vadd.f32 %v1327, %v1333
    %v1336 = vmul.f32 %v1334, 0.0078125
    %v1337 = vmul.f32 %v1335, 0.0078125
    %v1338 = vsub.f32 %v1325, %v1331
    %v1339 = vsub.f32 %v1327, %v1333
    %v1340 = vmul.f32 %v1338, 0.0078125
    %v1341 = vmul.f32 %v1339, 0.0078125
    %v1342 = vsel %vm1322, 1, 0
    %vm1343 = vcmp.eq.s32.totalorder %v1342, 1
    %v1344 = vsel %vm1343, %v1336, %v1340
    %v1345 = vsel %vm1343, %v1337, %v1341
    %v1346 = vsub.f32 %v1320, %v1344
    %v1347 = vsub.f32 %v1321, %v1345
    %v1348 = vmul.f32 %v1346, %v1346
    %v1349 = vmul.f32 %v1347, %v1347
    %1350 = vadd.xlane.f32.xlu0 %v1348
    %v1351 = vpop.xlane.xlu0 %1350
    %1352 = vadd.xlane.f32.xlu0 %v1349
    %v1353 = vpop.xlane.xlu0 %1352
    %v1354 = vmul.f32 %v1348, %v1323
    %v1355 = vmul.f32 %v1349, %v1323
    %1356 = vadd.xlane.f32.xlu0 %v1354
    %v1357 = vpop.xlane.xlu0 %1356
    %1358 = vadd.xlane.f32.xlu0 %v1355
    %v1359 = vpop.xlane.xlu0 %1358
    %v1360 = vadd.f32 %v1351, %v1357
    %v1361 = vadd.f32 %v1353, %v1359
    %v1362 = vmul.f32 %v1360, 0.0078125
    %v1363 = vmul.f32 %v1361, 0.0078125
    %v1364 = vsub.f32 %v1351, %v1357
    %v1365 = vsub.f32 %v1353, %v1359
    %v1366 = vmul.f32 %v1364, 0.0078125
    %v1367 = vmul.f32 %v1365, 0.0078125
    %v1368 = vsel %vm1343, %v1362, %v1366
    %v1369 = vsel %vm1343, %v1363, %v1367
    %v1370 = vadd.f32 %v1368, 1e-05
    %v1371 = vadd.f32 %v1369, 1e-05
    %v1372 = vrsqrt.pop %v1370
    %v1373 = vmul.f32 %v1372, %v1370
    %v1374 = vmul.f32 %v1373, %v1372
    %v1375 = vmul.f32 0.5, %v1374
    %v1376 = vsub.f32 1.5, %v1375
    %v1377 = vmul.f32 %v1372, %v1376
    %vm1378 = vweird.f32 %v1370
    %vm1379 = vweird.f32 %v1372
    %vm1380 = vmor %vm1378, %vm1379
    %v1381 = vsel %vm1380, %v1372, %v1377
    %v1382 = vrsqrt.pop %v1371
    %v1383 = vmul.f32 %v1382, %v1371
    %v1384 = vmul.f32 %v1383, %v1382
    %v1385 = vmul.f32 0.5, %v1384
    %v1386 = vsub.f32 1.5, %v1385
    %v1387 = vmul.f32 %v1382, %v1386
    %vm1388 = vweird.f32 %v1371
    %vm1389 = vweird.f32 %v1382
    %vm1390 = vmor %vm1388, %vm1389
    %v1391 = vsel %vm1390, %v1382, %v1387
    %v1392 = vmul.f32 %v1346, %v1381
    %v1393 = vmul.f32 %v1347, %v1391
    %v1394 = vpack.c.bf16 %v427, %v426
    %v1395 = vpack.c.bf16 %v1393, %v1392
    %v1396 = vpack.c.bf16 %v458, %v455
    %v1397 = vld [vmem:[#allocation7] sm:$0xff]
    %v1398 = vld [vmem:[#allocation7 + $0x8] sm:$0xff]
    %v1399 = vld [vmem:[#allocation7 + $0x10] sm:$0xff]
    %v1400 = vld [vmem:[#allocation7 + $0x18] sm:$0xff]
    %v1401 = vld [vmem:[#allocation7 + $0x20] sm:$0xff]
    %v1402 = vld [vmem:[#allocation7 + $0x28] sm:$0xff]
    %v1403 = vld [vmem:[#allocation7 + $0x30] sm:$0xff]
    %v1404 = vld [vmem:[#allocation7 + $0x38] sm:$0xff]
    %v1405 = vld [vmem:[#allocation7 + $0x40] sm:$0xff]
    %v1406 = vld [vmem:[#allocation7 + $0x48] sm:$0xff]
    %v1407 = vld [vmem:[#allocation7 + $0x50] sm:$0xff]
    %v1408 = vld [vmem:[#allocation7 + $0x58] sm:$0xff]
    %v1409 = vld [vmem:[#allocation7 + $0x60] sm:$0xff]
    %v1410 = vld [vmem:[#allocation7 + $0x68] sm:$0xff]
    %v1411 = vld [vmem:[#allocation7 + $0x70] sm:$0xff]
    %v1412 = vld [vmem:[#allocation7 + $0x78] sm:$0xff]
    %v1413 = vld [vmem:[#allocation7 + $0x80] sm:$0xff]
    %v1414 = vld [vmem:[#allocation7 + $0x88] sm:$0xff]
    %v1415 = vld [vmem:[#allocation7 + $0x90] sm:$0xff]
    %v1416 = vld [vmem:[#allocation7 + $0x98] sm:$0xff]
    %v1417 = vld [vmem:[#allocation7 + $0xa0] sm:$0xff]
    %v1418 = vld [vmem:[#allocation7 + $0xa8] sm:$0xff]
    %v1419 = vld [vmem:[#allocation7 + $0xb0] sm:$0xff]
    %v1420 = vld [vmem:[#allocation7 + $0xb8] sm:$0xff]
    %v1421 = vld [vmem:[#allocation7 + $0xc0] sm:$0xff]
    %v1422 = vld [vmem:[#allocation7 + $0xc8] sm:$0xff]
    %v1423 = vld [vmem:[#allocation7 + $0xd0] sm:$0xff]
    %v1424 = vld [vmem:[#allocation7 + $0xd8] sm:$0xff]
    %v1425 = vld [vmem:[#allocation7 + $0xe0] sm:$0xff]
    %v1426 = vld [vmem:[#allocation7 + $0xe8] sm:$0xff]
    %v1427 = vld [vmem:[#allocation7 + $0xf0] sm:$0xff]
    %v1428 = vld [vmem:[#allocation7 + $0xf8] sm:$0xff]
    %v1429 = vld [vmem:[#allocation7 + $0x100] sm:$0xff]
    %v1430 = vld [vmem:[#allocation7 + $0x108] sm:$0xff]
    %v1431 = vld [vmem:[#allocation7 + $0x110] sm:$0xff]
    %v1432 = vld [vmem:[#allocation7 + $0x118] sm:$0xff]
    %v1433 = vld [vmem:[#allocation7 + $0x120] sm:$0xff]
    %v1434 = vld [vmem:[#allocation7 + $0x128] sm:$0xff]
    %v1435 = vld [vmem:[#allocation7 + $0x130] sm:$0xff]
    %v1436 = vld [vmem:[#allocation7 + $0x138] sm:$0xff]
    %v1437 = vld [vmem:[#allocation7 + $0x140] sm:$0xff]
    %v1438 = vld [vmem:[#allocation7 + $0x148] sm:$0xff]
    %v1439 = vld [vmem:[#allocation7 + $0x150] sm:$0xff]
    %v1440 = vld [vmem:[#allocation7 + $0x158] sm:$0xff]
    %v1441 = vld [vmem:[#allocation7 + $0x160] sm:$0xff]
    %v1442 = vld [vmem:[#allocation7 + $0x168] sm:$0xff]
    %v1443 = vld [vmem:[#allocation7 + $0x170] sm:$0xff]
    %v1444 = vld [vmem:[#allocation7 + $0x178] sm:$0xff]
    %v1445 = vld [vmem:[%s9] sm:$0x3]
    %v1447 = vperm.slane %v1445, 0
    %v1448 = vperm.slane %v1445, 1
    %v1499 = vunpack.c.l.b16 %v1397
    %v1500 = vunpack.c.h.b16 %v1397
    %v1501 = vunpack.c.l.b16 %v1398
    %v1502 = vunpack.c.h.b16 %v1398
    %v1503 = vunpack.c.l.b16 %v1399
    %v1504 = vunpack.c.h.b16 %v1399
    %v1505 = vunpack.c.l.b16 %v1400
    %v1506 = vunpack.c.h.b16 %v1400
    %v1507 = vunpack.c.l.b16 %v1401
    %v1508 = vunpack.c.h.b16 %v1401
    %v1509 = vunpack.c.l.b16 %v1402
    %v1510 = vunpack.c.h.b16 %v1402
    %v1511 = vunpack.c.l.b16 %v1403
    %v1512 = vunpack.c.h.b16 %v1403
    %v1513 = vunpack.c.l.b16 %v1404
    %v1514 = vunpack.c.h.b16 %v1404
    %v1515 = vunpack.c.l.b16 %v1405
    %v1516 = vunpack.c.h.b16 %v1405
    %v1517 = vunpack.c.l.b16 %v1406
    %v1518 = vunpack.c.h.b16 %v1406
    %v1519 = vunpack.c.l.b16 %v1407
    %v1520 = vunpack.c.h.b16 %v1407
    %v1521 = vunpack.c.l.b16 %v1408
    %v1522 = vunpack.c.h.b16 %v1408
    %v1523 = vunpack.c.l.b16 %v1409
    %v1524 = vunpack.c.h.b16 %v1409
    %v1525 = vunpack.c.l.b16 %v1410
    %v1526 = vunpack.c.h.b16 %v1410
    %v1527 = vunpack.c.l.b16 %v1411
    %v1528 = vunpack.c.h.b16 %v1411
    %v1529 = vunpack.c.l.b16 %v1412
    %v1530 = vunpack.c.h.b16 %v1412
    %v1531 = vunpack.c.l.b16 %v1413
    %v1532 = vunpack.c.h.b16 %v1413
    %v1533 = vunpack.c.l.b16 %v1414
    %v1534 = vunpack.c.h.b16 %v1414
    %v1535 = vunpack.c.l.b16 %v1415
    %v1536 = vunpack.c.h.b16 %v1415
    %v1537 = vunpack.c.l.b16 %v1416
    %v1538 = vunpack.c.h.b16 %v1416
    %v1539 = vunpack.c.l.b16 %v1417
    %v1540 = vunpack.c.h.b16 %v1417
    %v1541 = vunpack.c.l.b16 %v1418
    %v1542 = vunpack.c.h.b16 %v1418
    %v1543 = vunpack.c.l.b16 %v1419
    %v1544 = vunpack.c.h.b16 %v1419
    %v1545 = vunpack.c.l.b16 %v1420
    %v1546 = vunpack.c.h.b16 %v1420
    %v1547 = vunpack.c.l.b16 %v1421
    %v1548 = vunpack.c.h.b16 %v1421
    %v1549 = vunpack.c.l.b16 %v1422
    %v1550 = vunpack.c.h.b16 %v1422
    %v1551 = vunpack.c.l.b16 %v1423
    %v1552 = vunpack.c.h.b16 %v1423
    %v1553 = vunpack.c.l.b16 %v1424
    %v1554 = vunpack.c.h.b16 %v1424
    %v1555 = vunpack.c.l.b16 %v1425
    %v1556 = vunpack.c.h.b16 %v1425
    %v1557 = vunpack.c.l.b16 %v1426
    %v1558 = vunpack.c.h.b16 %v1426
    %v1559 = vunpack.c.l.b16 %v1427
    %v1560 = vunpack.c.h.b16 %v1427
    %v1561 = vunpack.c.l.b16 %v1428
    %v1562 = vunpack.c.h.b16 %v1428
    %v1563 = vunpack.c.l.b16 %v1429
    %v1564 = vunpack.c.h.b16 %v1429
    %v1565 = vunpack.c.l.b16 %v1430
    %v1566 = vunpack.c.h.b16 %v1430
    %v1567 = vunpack.c.l.b16 %v1431
    %v1568 = vunpack.c.h.b16 %v1431
    %v1569 = vunpack.c.l.b16 %v1432
    %v1570 = vunpack.c.h.b16 %v1432
    %v1571 = vunpack.c.l.b16 %v1433
    %v1572 = vunpack.c.h.b16 %v1433
    %v1573 = vunpack.c.l.b16 %v1434
    %v1574 = vunpack.c.h.b16 %v1434
    %v1575 = vunpack.c.l.b16 %v1435
    %v1576 = vunpack.c.h.b16 %v1435
    %v1577 = vunpack.c.l.b16 %v1436
    %v1578 = vunpack.c.h.b16 %v1436
    %v1579 = vunpack.c.l.b16 %v1437
    %v1580 = vunpack.c.h.b16 %v1437
    %v1581 = vunpack.c.l.b16 %v1438
    %v1582 = vunpack.c.h.b16 %v1438
    %v1583 = vunpack.c.l.b16 %v1439
    %v1584 = vunpack.c.h.b16 %v1439
    %v1585 = vunpack.c.l.b16 %v1440
    %v1586 = vunpack.c.h.b16 %v1440
    %v1587 = vunpack.c.l.b16 %v1441
    %v1588 = vunpack.c.h.b16 %v1441
    %v1589 = vunpack.c.l.b16 %v1442
    %v1590 = vunpack.c.h.b16 %v1442
    %v1591 = vunpack.c.l.b16 %v1443
    %v1592 = vunpack.c.h.b16 %v1443
    %v1593 = vunpack.c.l.b16 %v1444
    %v1594 = vunpack.c.h.b16 %v1444
    %v1595 = vpack.c.b16 %v1501, %v1499
    %v1596 = vpack.c.b16 %v1502, %v1500
    %v1597 = vpack.c.b16 %v1505, %v1503
    %v1598 = vpack.c.b16 %v1506, %v1504
    %v1599 = vpack.c.b16 %v1509, %v1507
    %v1600 = vpack.c.b16 %v1510, %v1508
    %v1601 = vpack.c.b16 %v1513, %v1511
    %v1602 = vpack.c.b16 %v1514, %v1512
    %v1603 = vpack.c.b16 %v1517, %v1515
    %v1604 = vpack.c.b16 %v1518, %v1516
    %v1605 = vpack.c.b16 %v1521, %v1519
    %v1606 = vpack.c.b16 %v1522, %v1520
    %v1607 = vpack.c.b16 %v1525, %v1523
    %v1608 = vpack.c.b16 %v1526, %v1524
    %v1609 = vpack.c.b16 %v1529, %v1527
    %v1610 = vpack.c.b16 %v1530, %v1528
    %v1611 = vpack.c.b16 %v1533, %v1531
    %v1612 = vpack.c.b16 %v1534, %v1532
    %v1613 = vpack.c.b16 %v1537, %v1535
    %v1614 = vpack.c.b16 %v1538, %v1536
    %v1615 = vpack.c.b16 %v1541, %v1539
    %v1616 = vpack.c.b16 %v1542, %v1540
    %v1617 = vpack.c.b16 %v1545, %v1543
    %v1618 = vpack.c.b16 %v1546, %v1544
    %v1619 = vpack.c.b16 %v1549, %v1547
    %v1620 = vpack.c.b16 %v1550, %v1548
    %v1621 = vpack.c.b16 %v1553, %v1551
    %v1622 = vpack.c.b16 %v1554, %v1552
    %v1623 = vpack.c.b16 %v1557, %v1555
    %v1624 = vpack.c.b16 %v1558, %v1556
    %v1625 = vpack.c.b16 %v1561, %v1559
    %v1626 = vpack.c.b16 %v1562, %v1560
    %v1627 = vpack.c.b16 %v1565, %v1563
    %v1628 = vpack.c.b16 %v1566, %v1564
    %v1629 = vpack.c.b16 %v1569, %v1567
    %v1630 = vpack.c.b16 %v1570, %v1568
    %v1631 = vpack.c.b16 %v1573, %v1571
    %v1632 = vpack.c.b16 %v1574, %v1572
    %v1633 = vpack.c.b16 %v1577, %v1575
    %v1634 = vpack.c.b16 %v1578, %v1576
    %v1635 = vpack.c.b16 %v1581, %v1579
    %v1636 = vpack.c.b16 %v1582, %v1580
    %v1637 = vpack.c.b16 %v1585, %v1583
    %v1638 = vpack.c.b16 %v1586, %v1584
    %v1639 = vpack.c.b16 %v1589, %v1587
    %v1640 = vpack.c.b16 %v1590, %v1588
    %v1641 = vpack.c.b16 %v1593, %v1591
    %v1642 = vpack.c.b16 %v1594, %v1592
    %1691 = vmatpush.bf16.msra.mxu0 %v1609
    %1692 = vmatpush.bf16.msra.mxu0 %v1607
    %1693 = vmatpush.bf16.msra.mxu0 %v1605
    %1694 = vmatpush.bf16.msra.mxu0 %v1603
    %1695 = vmatpush.bf16.msra.mxu0 %v1601
    %1696 = vmatpush.bf16.msra.mxu0 %v1599
    %1697 = vmatpush.bf16.msra.mxu0 %v1597
    %1698 = vmatpush.bf16.msra.mxu0 %v1595
    %1699 = vmatmul.bf16.gmra.mxu0 %v1394
    %v1700 = vpop.f32.mrf.mxu0
    %v1701 = vadd.f32 %v1447, %v1700
    %v1702 = vpop.f32.mrf.mxu0
    %v1703 = vadd.f32 %v1447, %v1702
    %1704 = vdwg.mxu0
    %1705 = vmatpush.bf16.msra.mxu0 %v1625
    %1706 = vmatpush.bf16.msra.mxu0 %v1623
    %1707 = vmatpush.bf16.msra.mxu0 %v1621
    %1708 = vmatpush.bf16.msra.mxu0 %v1619
    %1709 = vmatpush.bf16.msra.mxu0 %v1617
    %1710 = vmatpush.bf16.msra.mxu0 %v1615
    %1711 = vmatpush.bf16.msra.mxu0 %v1613
    %1712 = vmatpush.bf16.msra.mxu0 %v1611
    %1713 = vmatmul.bf16.gmra.mxu0 %v1395
    %v1714 = vpop.f32.mrf.mxu0
    %v1715 = vadd.f32 %v1701, %v1714
    %v1716 = vpop.f32.mrf.mxu0
    %v1717 = vadd.f32 %v1703, %v1716
    %1718 = vdwg.mxu0
    %1719 = vmatpush.bf16.msra.mxu0 %v1641
    %1720 = vmatpush.bf16.msra.mxu0 %v1639
    %1721 = vmatpush.bf16.msra.mxu0 %v1637
    %1722 = vmatpush.bf16.msra.mxu0 %v1635
    %1723 = vmatpush.bf16.msra.mxu0 %v1633
    %1724 = vmatpush.bf16.msra.mxu0 %v1631
    %1725 = vmatpush.bf16.msra.mxu0 %v1629
    %1726 = vmatpush.bf16.msra.mxu0 %v1627
    %1727 = vmatmul.bf16.gmra.mxu0 %v1396
    %v1728 = vpop.f32.mrf.mxu0
    %v1729 = vadd.f32 %v1715, %v1728
    %v1730 = vpop.f32.mrf.mxu0
    %v1731 = vadd.f32 %v1717, %v1730
    %1732 = vdwg.mxu0
    %1733 = vmatpush.bf16.msra.mxu0 %v1610
    %1734 = vmatpush.bf16.msra.mxu0 %v1608
    %1735 = vmatpush.bf16.msra.mxu0 %v1606
    %1736 = vmatpush.bf16.msra.mxu0 %v1604
    %1737 = vmatpush.bf16.msra.mxu0 %v1602
    %1738 = vmatpush.bf16.msra.mxu0 %v1600
    %1739 = vmatpush.bf16.msra.mxu0 %v1598
    %1740 = vmatpush.bf16.msra.mxu0 %v1596
    %1741 = vmatmul.bf16.gmra.mxu0 %v1394
    %v1742 = vpop.f32.mrf.mxu0
    %v1743 = vadd.f32 %v1448, %v1742
    %v1744 = vpop.f32.mrf.mxu0
    %v1745 = vadd.f32 %v1448, %v1744
    %1746 = vdwg.mxu0
    %1747 = vmatpush.bf16.msra.mxu0 %v1626
    %1748 = vmatpush.bf16.msra.mxu0 %v1624
    %1749 = vmatpush.bf16.msra.mxu0 %v1622
    %1750 = vmatpush.bf16.msra.mxu0 %v1620
    %1751 = vmatpush.bf16.msra.mxu0 %v1618
    %1752 = vmatpush.bf16.msra.mxu0 %v1616
    %1753 = vmatpush.bf16.msra.mxu0 %v1614
    %1754 = vmatpush.bf16.msra.mxu0 %v1612
    %1755 = vmatmul.bf16.gmra.mxu0 %v1395
    %v1756 = vpop.f32.mrf.mxu0
    %v1757 = vadd.f32 %v1743, %v1756
    %v1758 = vpop.f32.mrf.mxu0
    %v1759 = vadd.f32 %v1745, %v1758
    %1760 = vdwg.mxu0
    %1761 = vmatpush.bf16.msra.mxu0 %v1642
    %1762 = vmatpush.bf16.msra.mxu0 %v1640
    %1763 = vmatpush.bf16.msra.mxu0 %v1638
    %1764 = vmatpush.bf16.msra.mxu0 %v1636
    %1765 = vmatpush.bf16.msra.mxu0 %v1634
    %1766 = vmatpush.bf16.msra.mxu0 %v1632
    %1767 = vmatpush.bf16.msra.mxu0 %v1630
    %1768 = vmatpush.bf16.msra.mxu0 %v1628
    %1769 = vmatmul.bf16.gmra.mxu0 %v1396
    %v1770 = vpop.f32.mrf.mxu0
    %v1771 = vadd.f32 %v1757, %v1770
    %v1772 = vpop.f32.mrf.mxu0
    %v1773 = vadd.f32 %v1759, %v1772
    %1774 = vdwg.mxu0
    %v1775 = vxor.u32 %v1729, 2147483648
    %v1776 = vxor.u32 %v1771, 2147483648
    %v1777 = vxor.u32 %v1731, 2147483648
    %v1778 = vxor.u32 %v1773, 2147483648
    %v1779 = vmul.f32 %v1775, 1.442695
    %v1780 = vpow.pop %v1779
    %v1781 = vmul.f32 %v1776, 1.442695
    %v1782 = vpow.pop %v1781
    %v1783 = vmul.f32 %v1777, 1.442695
    %v1784 = vpow.pop %v1783
    %v1785 = vmul.f32 %v1778, 1.442695
    %v1786 = vpow.pop %v1785
    %v1787 = vadd.f32 %v1780, 1.0
    %v1788 = vadd.f32 %v1782, 1.0
    %v1789 = vadd.f32 %v1784, 1.0
    %v1790 = vadd.f32 %v1786, 1.0
    %v1791 = vrcp.pop %v1787
    %v1792 = vmul.f32 %v1787, %v1791
    %v1793 = vsub.f32 1.0, %v1792
    %v1794 = vmul.f32 %v1791, %v1793
    %v1795 = vadd.f32 %v1791, %v1794
    %vm1796 = vweird.f32 %v1787
    %vm1797 = vweird.f32 %v1791
    %vm1798 = vmor %vm1796, %vm1797
    %v1799 = vsel %vm1798, %v1791, %v1795
    %v1800 = vand.u32 2147483647, %v1787
    %vm1801 = vcmp.eq.f32.partialorder %v1800, 8.507059e+37
    %v1802 = vand.u32 %v1787, 2147483648
    %v1803 = vor.u32 1.1754944e-38, %v1802
    %v1804 = vsel %vm1801, %v1803, %v1799
    %v1805 = vmul.f32 1.0, %v1804
    %v1806 = vrcp.pop %v1788
    %v1807 = vmul.f32 %v1788, %v1806
    %v1808 = vsub.f32 1.0, %v1807
    %v1809 = vmul.f32 %v1806, %v1808
    %v1810 = vadd.f32 %v1806, %v1809
    %vm1811 = vweird.f32 %v1788
    %vm1812 = vweird.f32 %v1806
    %vm1813 = vmor %vm1811, %vm1812
    %v1814 = vsel %vm1813, %v1806, %v1810
    %v1815 = vand.u32 2147483647, %v1788
    %vm1816 = vcmp.eq.f32.partialorder %v1815, 8.507059e+37
    %v1817 = vand.u32 %v1788, 2147483648
    %v1818 = vor.u32 1.1754944e-38, %v1817
    %v1819 = vsel %vm1816, %v1818, %v1814
    %v1820 = vmul.f32 1.0, %v1819
    %v1821 = vrcp.pop %v1789
    %v1822 = vmul.f32 %v1789, %v1821
    %v1823 = vsub.f32 1.0, %v1822
    %v1824 = vmul.f32 %v1821, %v1823
    %v1825 = vadd.f32 %v1821, %v1824
    %vm1826 = vweird.f32 %v1789
    %vm1827 = vweird.f32 %v1821
    %vm1828 = vmor %vm1826, %vm1827
    %v1829 = vsel %vm1828, %v1821, %v1825
    %v1830 = vand.u32 2147483647, %v1789
    %vm1831 = vcmp.eq.f32.partialorder %v1830, 8.507059e+37
    %v1832 = vand.u32 %v1789, 2147483648
    %v1833 = vor.u32 1.1754944e-38, %v1832
    %v1834 = vsel %vm1831, %v1833, %v1829
    %v1835 = vmul.f32 1.0, %v1834
    %v1836 = vrcp.pop %v1790
    %v1837 = vmul.f32 %v1790, %v1836
    %v1838 = vsub.f32 1.0, %v1837
    %v1839 = vmul.f32 %v1836, %v1838
    %v1840 = vadd.f32 %v1836, %v1839
    %vm1841 = vweird.f32 %v1790
    %vm1842 = vweird.f32 %v1836
    %vm1843 = vmor %vm1841, %vm1842
    %v1844 = vsel %vm1843, %v1836, %v1840
    %v1845 = vand.u32 2147483647, %v1790
    %vm1846 = vcmp.eq.f32.partialorder %v1845, 8.507059e+37
    %v1847 = vand.u32 %v1790, 2147483648
    %v1848 = vor.u32 1.1754944e-38, %v1847
    %v1849 = vsel %vm1846, %v1848, %v1844
    %v1850 = vmul.f32 1.0, %v1849
    %v1851 = vmul.f32 %v1729, %v1805
    %v1852 = vmul.f32 %v1771, %v1820
    %v1853 = vmul.f32 %v1731, %v1835
    %v1854 = vmul.f32 %v1773, %v1850
    %v1855 = vpack.c.bf16 %v1853, %v1851
    %v1856 = vpack.c.bf16 %v1854, %v1852
    %v1857 = vld [vmem:[#allocation9] sm:$0xf]
    %v1858 = vld [vmem:[#allocation9 + $0x4] sm:$0xf]
    %v1859 = vld [vmem:[#allocation9 + $0x8] sm:$0xf]
    %v1860 = vld [vmem:[#allocation9 + $0xc] sm:$0xf]
    %v1861 = vld [vmem:[#allocation9 + $0x10] sm:$0xf]
    %v1862 = vld [vmem:[#allocation9 + $0x14] sm:$0xf]
    %v1863 = vld [vmem:[#allocation9 + $0x18] sm:$0xf]
    %v1864 = vld [vmem:[#allocation9 + $0x1c] sm:$0xf]
    %v1865 = vld [vmem:[#allocation9 + $0x20] sm:$0xf]
    %v1866 = vld [vmem:[#allocation9 + $0x24] sm:$0xf]
    %v1867 = vld [vmem:[#allocation9 + $0x28] sm:$0xf]
    %v1868 = vld [vmem:[#allocation9 + $0x2c] sm:$0xf]
    %v1869 = vld [vmem:[#allocation9 + $0x30] sm:$0xf]
    %v1870 = vld [vmem:[#allocation9 + $0x34] sm:$0xf]
    %v1871 = vld [vmem:[#allocation9 + $0x38] sm:$0xf]
    %v1872 = vld [vmem:[#allocation9 + $0x3c] sm:$0xf]
    %v1873 = vld [vmem:[#allocation9 + $0x40] sm:$0xf]
    %v1874 = vld [vmem:[#allocation9 + $0x44] sm:$0xf]
    %v1875 = vld [vmem:[#allocation9 + $0x48] sm:$0xf]
    %v1876 = vld [vmem:[#allocation9 + $0x4c] sm:$0xf]
    %v1877 = vld [vmem:[#allocation9 + $0x50] sm:$0xf]
    %v1878 = vld [vmem:[#allocation9 + $0x54] sm:$0xf]
    %v1879 = vld [vmem:[#allocation9 + $0x58] sm:$0xf]
    %v1880 = vld [vmem:[#allocation9 + $0x5c] sm:$0xf]
    %v1881 = vld [vmem:[#allocation9 + $0x60] sm:$0xf]
    %v1882 = vld [vmem:[#allocation9 + $0x64] sm:$0xf]
    %v1883 = vld [vmem:[#allocation9 + $0x68] sm:$0xf]
    %v1884 = vld [vmem:[#allocation9 + $0x6c] sm:$0xf]
    %v1885 = vld [vmem:[#allocation9 + $0x70] sm:$0xf]
    %v1886 = vld [vmem:[#allocation9 + $0x74] sm:$0xf]
    %v1887 = vld [vmem:[#allocation9 + $0x78] sm:$0xf]
    %v1888 = vld [vmem:[#allocation9 + $0x7c] sm:$0xf]
    %v1889 = vld [vmem:[%s11] sm:$0x1]
    %v1891 = vperm.slane %v1889, 0
    %v1925 = vunpack.c.l.b16 %v1857
    %v1926 = vunpack.c.l.b16 %v1858
    %v1927 = vunpack.c.l.b16 %v1859
    %v1928 = vunpack.c.l.b16 %v1860
    %v1929 = vunpack.c.l.b16 %v1861
    %v1930 = vunpack.c.l.b16 %v1862
    %v1931 = vunpack.c.l.b16 %v1863
    %v1932 = vunpack.c.l.b16 %v1864
    %v1933 = vunpack.c.l.b16 %v1865
    %v1934 = vunpack.c.l.b16 %v1866
    %v1935 = vunpack.c.l.b16 %v1867
    %v1936 = vunpack.c.l.b16 %v1868
    %v1937 = vunpack.c.l.b16 %v1869
    %v1938 = vunpack.c.l.b16 %v1870
    %v1939 = vunpack.c.l.b16 %v1871
    %v1940 = vunpack.c.l.b16 %v1872
    %v1941 = vunpack.c.l.b16 %v1873
    %v1942 = vunpack.c.l.b16 %v1874
    %v1943 = vunpack.c.l.b16 %v1875
    %v1944 = vunpack.c.l.b16 %v1876
    %v1945 = vunpack.c.l.b16 %v1877
    %v1946 = vunpack.c.l.b16 %v1878
    %v1947 = vunpack.c.l.b16 %v1879
    %v1948 = vunpack.c.l.b16 %v1880
    %v1949 = vunpack.c.l.b16 %v1881
    %v1950 = vunpack.c.l.b16 %v1882
    %v1951 = vunpack.c.l.b16 %v1883
    %v1952 = vunpack.c.l.b16 %v1884
    %v1953 = vunpack.c.l.b16 %v1885
    %v1954 = vunpack.c.l.b16 %v1886
    %v1955 = vunpack.c.l.b16 %v1887
    %v1956 = vunpack.c.l.b16 %v1888
    %v1957 = vpack.c.b16 %v1926, %v1925
    %v1958 = vpack.c.b16 %v1928, %v1927
    %v1959 = vpack.c.b16 %v1930, %v1929
    %v1960 = vpack.c.b16 %v1932, %v1931
    %v1961 = vpack.c.b16 %v1934, %v1933
    %v1962 = vpack.c.b16 %v1936, %v1935
    %v1963 = vpack.c.b16 %v1938, %v1937
    %v1964 = vpack.c.b16 %v1940, %v1939
    %v1965 = vpack.c.b16 %v1942, %v1941
    %v1966 = vpack.c.b16 %v1944, %v1943
    %v1967 = vpack.c.b16 %v1946, %v1945
    %v1968 = vpack.c.b16 %v1948, %v1947
    %v1969 = vpack.c.b16 %v1950, %v1949
    %v1970 = vpack.c.b16 %v1952, %v1951
    %v1971 = vpack.c.b16 %v1954, %v1953
    %v1972 = vpack.c.b16 %v1956, %v1955
    %1989 = vmatpush.bf16.msra.mxu0 %v1964
    %1990 = vmatpush.bf16.msra.mxu0 %v1963
    %1991 = vmatpush.bf16.msra.mxu0 %v1962
    %1992 = vmatpush.bf16.msra.mxu0 %v1961
    %1993 = vmatpush.bf16.msra.mxu0 %v1960
    %1994 = vmatpush.bf16.msra.mxu0 %v1959
    %1995 = vmatpush.bf16.msra.mxu0 %v1958
    %1996 = vmatpush.bf16.msra.mxu0 %v1957
    %1997 = vmatmul.bf16.gmra.mxu0 %v1855
    %v1998 = vpop.f32.mrf.mxu0
    %v1999 = vadd.f32 %v1891, %v1998
    %v2000 = vpop.f32.mrf.mxu0
    %v2001 = vadd.f32 %v1891, %v2000
    %2002 = vdwg.mxu0
    %2003 = vmatpush.bf16.msra.mxu0 %v1972
    %2004 = vmatpush.bf16.msra.mxu0 %v1971
    %2005 = vmatpush.bf16.msra.mxu0 %v1970
    %2006 = vmatpush.bf16.msra.mxu0 %v1969
    %2007 = vmatpush.bf16.msra.mxu0 %v1968
    %2008 = vmatpush.bf16.msra.mxu0 %v1967
    %2009 = vmatpush.bf16.msra.mxu0 %v1966
    %2010 = vmatpush.bf16.msra.mxu0 %v1965
    %2011 = vmatmul.bf16.gmra.mxu0 %v1856
    %v2012 = vpop.f32.mrf.mxu0
    %v2013 = vadd.f32 %v1999, %v2012
    %v2014 = vpop.f32.mrf.mxu0
    %v2015 = vadd.f32 %v2001, %v2014
    %2016 = vdwg.mxu0
    %2017 = vst [vmem:[%s12] sm:$0xff] %v2013
    %2018 = vst [vmem:[%s12 + $0x8] sm:$0xff] %v2015
    // Predicated region
    $region70: #{mamba_conv_text_encoder.1} parent=1 // pred_check
      _
    $region71: #{mamba_conv_text_encoder.1} parent=1 // pred_check_branch
      %2020 = sbr.rel (0) target = $region73
    $region72: #{mamba_conv_text_encoder.1} parent=1 // pred_region
      _
    $region73: #{mamba_conv_text_encoder.1} parent=1 // pred_fallthru
      _
    // Predicated region
    $region74: #{mamba_conv_text_encoder.1} parent=1 // pred_check
      _
    $region75: #{mamba_conv_text_encoder.1} parent=1 // pred_check_branch
      %2022 = sbr.rel (0) target = $region77
    $region76: #{mamba_conv_text_encoder.1} parent=1 // pred_region
      _
    $region77: #{mamba_conv_text_encoder.1} parent=1 // pred_fallthru
      _
    %2023 = vsyncpa [#allocation3], 1
    %2024 = vsyncpa [#allocation5], 1
    %2025 = vsyncpa [#allocation8], 1

</llo_original>
